<compile_context>
chip_gen: v7x
topology: tpu7x:2x2x1
jax: 0.10.0
libtpu: 0.0.40
codegen_flags: <defaults>
</compile_context>

<pallas_src>
import jax
import jax.numpy as jnp
from jax import lax
from jax.experimental import pallas as pl
from jax.experimental.pallas import tpu as pltpu

EPS = 1e-5


# ------------------------------- fused kernel --------------------------------

def _make_fused_kernel(N, H, W, P):
    NH = N * H
    L = W * P                      # lane width of the packed activations
    count = float(N * H * W)       # elements per channel for BN batch stats

    def shift_rows(a, oy, valid):
        # tap[r, :] = a[r + oy, :] within each H-row image, zero at the border.
        zero = jnp.zeros((1, L), a.dtype)
        if oy < 0:
            shifted = jnp.concatenate([zero, a[:-1, :]], axis=0)   # a[r-1]
        else:
            shifted = jnp.concatenate([a[1:, :], zero], axis=0)    # a[r+1]
        return jnp.where(valid, shifted, 0.0)

    def conv3x3(a, wb_ref, valid_up, valid_dn):
        # a: (NH, W*Cin) f32; wb_ref: (3, W*Cin, W*Cout) bf16 (dx + channels folded in).
        taps = (shift_rows(a, -1, valid_up), a, shift_rows(a, +1, valid_dn))
        acc = jnp.zeros((NH, L), jnp.float32)
        for dy in range(3):
            acc = acc + jnp.dot(taps[dy].astype(jnp.bfloat16), wb_ref[dy],
                                preferred_element_type=jnp.float32)
        return acc

    def bn_train(y, gamma, beta, G, GT):
        # Training-mode BN over (n, y, x) per channel p = lane % P, biased variance.
        mean = jnp.dot(jnp.sum(y, axis=0, keepdims=True), G,
                       preferred_element_type=jnp.float32) / count        # (1, P)
        mean_w = jnp.dot(mean, GT, preferred_element_type=jnp.float32)    # (1, L)
        d = y - mean_w
        var = jnp.dot(jnp.sum(d * d, axis=0, keepdims=True), G,
                      preferred_element_type=jnp.float32) / count         # (1, P)
        scale = gamma * lax.rsqrt(var + EPS)                              # (1, P)
        shift = beta - mean * scale
        scale_w = jnp.dot(scale, GT, preferred_element_type=jnp.float32)  # (1, L)
        shift_w = jnp.dot(shift, GT, preferred_element_type=jnp.float32)
        return y * scale_w + shift_w

    def kernel(x_ref, wb1_ref, wb2_ref, bn_ref, g_ref, gt_ref, out_ref):
        x = x_ref[...]                        # (NH, L) f32, lanes pack (W, C)
        G = g_ref[...]                        # (L, P) 0/1 reduce matrix
        GT = gt_ref[...]                      # (P, L) 0/1 broadcast matrix
        bnv = bn_ref[...]                     # (4, P): gamma1, beta1, gamma2, beta2

        r = lax.broadcasted_iota(jnp.int32, (NH, L), 0)
        valid_up = (r % H) >= 1               # a row above exists inside the image
        valid_dn = (r % H) < (H - 1)          # a row below exists inside the image

        y1 = conv3x3(x, wb1_ref, valid_up, valid_dn)
        a1 = jnp.maximum(bn_train(y1, bnv[0:1, :], bnv[1:2, :], G, GT), 0.0)
        y2 = conv3x3(a1, wb2_ref, valid_up, valid_dn)
        a2 = bn_train(y2, bnv[2:3, :], bnv[3:4, :], G, GT)
        out_ref[...] = jnp.maximum(a2 + x, 0.0)    # residual (identity) + relu

    return kernel


# --------------------------------- wrapper ------------------------------------

def basic_block_forward(x_nchw, w1_oihw, w2_oihw, bn1_g, bn1_b, bn2_g, bn2_b, k):
    """NCHW in / NCHW out, matching BasicBlock.forward([x, k])."""
    N, C, H, W = x_nchw.shape
    P = w1_oihw.shape[0]
    assert C == P, "identity path requires inplanes == planes (no downsample)"
    L = W * C                                   # 16 * 8 = 128 -> lane-dense

    # Lane-dense packed activations: NHWC reshaped to (N*H, W*C).
    x2 = jnp.transpose(x_nchw, (0, 2, 3, 1)).astype(jnp.float32).reshape(N * H, L)

    # OIHW -> HWIO, then fold dx taps + channel mixing into one (W*Cin, W*Cout)
    # matrix per dy:  Wb[dy, xi*Cin + c, xo*Cout + p] = sum_dx [xi == xo+dx-1] * w[dy,dx,c,p]
    xi = jnp.arange(W)[:, None]
    xo = jnp.arange(W)[None, :]
    ind = jnp.stack([(xi == xo + dx - 1) for dx in range(3)],
                    axis=0).astype(jnp.float32)                       # (3, W, W)

    def big_w(w_oihw):
        w_hwio = jnp.transpose(w_oihw, (2, 3, 1, 0)).astype(jnp.float32)  # (3,3,Ci,Co)
        ci, co = w_hwio.shape[2], w_hwio.shape[3]
        wb = jnp.einsum('dio,ydcp->yicop', ind, w_hwio)               # (3, W, Ci, W, Co)
        return wb.reshape(3, W * ci, W * co).astype(jnp.bfloat16)

    wb1 = big_w(w1_oihw)                                              # (3, L, L)
    wb2 = big_w(w2_oihw)                                              # (3, L, L)

    # Task-k BN affine params, stacked.
    bn = jnp.stack([bn1_g[k], bn1_b[k], bn2_g[k], bn2_b[k]],
                   axis=0).astype(jnp.float32)                        # (4, P)

    # Constant 0/1 matrices for per-channel (lane % P) reduce / broadcast.
    G = (jnp.arange(L)[:, None] % P == jnp.arange(P)[None, :]).astype(jnp.float32)
    GT = G.T

    kernel = _make_fused_kernel(N, H, W, P)
    out2 = pl.pallas_call(
        kernel,
        grid=(1,),
        in_specs=[pl.BlockSpec((N * H, L), lambda i: (0, 0)),
                  pl.BlockSpec((3, L, L), lambda i: (0, 0, 0)),
                  pl.BlockSpec((3, L, L), lambda i: (0, 0, 0)),
                  pl.BlockSpec((4, P), lambda i: (0, 0)),
                  pl.BlockSpec((L, P), lambda i: (0, 0)),
                  pl.BlockSpec((P, L), lambda i: (0, 0))],
        out_specs=pl.BlockSpec((N * H, L), lambda i: (0, 0)),
        out_shape=jax.ShapeDtypeStruct((N * H, L), jnp.float32),
        compiler_params=pltpu.CompilerParams(
            dimension_semantics=("arbitrary",),
            vmem_limit_bytes=32 * 1024 * 1024),
    )(x2, wb1, wb2, bn, G, GT)

    # TODO(synk): for real pipelines keep the packed NHWC layout between blocks and
    #             emit bf16; NCHW f32 is kept here only to match the module interface.
    out = jnp.transpose(out2.reshape(N, H, W, P), (0, 3, 1, 2))
    return out, k


# -------------------------------- reference -----------------------------------

def reference_forward(x, w1, w2, g1, b1, g2, b2):
    """Pure-JAX f32 reference (NCHW), matching PyTorch training-mode BN."""
    def conv(xx, ww):
        return lax.conv_general_dilated(
            xx, ww, window_strides=(1, 1), padding=((1, 1), (1, 1)),
            dimension_numbers=('NCHW', 'OIHW', 'NCHW'))

    def bn(xx, g, b):
        m = jnp.mean(xx, axis=(0, 2, 3), keepdims=True)
        v = jnp.mean((xx - m) ** 2, axis=(0, 2, 3), keepdims=True)
        return ((xx - m) / jnp.sqrt(v + EPS)) * g.reshape(1, -1, 1, 1) \
            + b.reshape(1, -1, 1, 1)

    out = jax.nn.relu(bn(conv(x, w1), g1, b1))
    out = bn(conv(out, w2), g2, b2)
    return jax.nn.relu(out + x)


if __name__ == "__main__":
    key = jax.random.PRNGKey(0)
    N, C, H, W = 2, 8, 16, 16          # inplanes == planes == 8, W*C = 128 lanes
    num_tasks, k = 3, 1

    ks = jax.random.split(key, 7)
    x = jax.random.normal(ks[0], (N, C, H, W), jnp.float32)
    w1 = jax.random.normal(ks[1], (C, C, 3, 3), jnp.float32) * 0.1   # conv1 OIHW
    w2 = jax.random.normal(ks[2], (C, C, 3, 3), jnp.float32) * 0.1   # conv2 OIHW
    bn1_g = 1.0 + 0.1 * jax.random.normal(ks[3], (num_tasks, C), jnp.float32)
    bn1_b = 0.1 * jax.random.normal(ks[4], (num_tasks, C), jnp.float32)
    bn2_g = 1.0 + 0.1 * jax.random.normal(ks[5], (num_tasks, C), jnp.float32)
    bn2_b = 0.1 * jax.random.normal(ks[6], (num_tasks, C), jnp.float32)

    out, k_out = basic_block_forward(x, w1, w2, bn1_g, bn1_b, bn2_g, bn2_b, k)
    out = jax.block_until_ready(out)

    ref = reference_forward(x, w1, w2, bn1_g[k], bn1_b[k], bn2_g[k], bn2_b[k])
    assert out.shape == ref.shape == (N, C, H, W)
    assert k_out == k
    # bf16 MXU operands (f32 accumulation) across two convs + BN -> bf16-level
    # tolerance vs the pure-f32 reference.
    assert jnp.allclose(out, ref, rtol=5e-2, atol=5e-2), \
        f"max abs err {jnp.max(jnp.abs(out - ref))}"

    print("KERNEL_OK")
</pallas_src>

<mosaic_0001>
module attributes {stable_mosaic.version = 11 : i64} {
  func.func @kernel(%arg0: i32, %arg1: memref<32x128xf32, #tpu.memory_space<vmem>>, %arg2: memref<3x128x128xbf16, #tpu.memory_space<vmem>>, %arg3: memref<3x128x128xbf16, #tpu.memory_space<vmem>>, %arg4: memref<4x8xf32, #tpu.memory_space<vmem>>, %arg5: memref<128x8xf32, #tpu.memory_space<vmem>>, %arg6: memref<8x128xf32, #tpu.memory_space<vmem>>, %arg7: memref<32x128xf32, #tpu.memory_space<vmem>>) attributes {dimension_semantics = [#tpu.dimension_semantics<arbitrary>], iteration_bounds = array<i64: 1>, scalar_prefetch = 0 : i64, scratch_operands = 0 : i64, tpu.core_type = #tpu.core_type<tc>, window_params = [{pipeline_mode = #tpu.pipeline_mode<synchronous>, transform_indices = @transform_0, window_bounds = array<i64: 32, 128>}, {pipeline_mode = #tpu.pipeline_mode<synchronous>, transform_indices = @transform_1, window_bounds = array<i64: 3, 128, 128>}, {pipeline_mode = #tpu.pipeline_mode<synchronous>, transform_indices = @transform_2, window_bounds = array<i64: 3, 128, 128>}, {pipeline_mode = #tpu.pipeline_mode<synchronous>, transform_indices = @transform_3, window_bounds = array<i64: 4, 8>}, {pipeline_mode = #tpu.pipeline_mode<synchronous>, transform_indices = @transform_4, window_bounds = array<i64: 128, 8>}, {pipeline_mode = #tpu.pipeline_mode<synchronous>, transform_indices = @transform_5, window_bounds = array<i64: 8, 128>}, {pipeline_mode = #tpu.pipeline_mode<synchronous>, transform_indices = @transform_6, window_bounds = array<i64: 32, 128>}]} {
    %c0 = arith.constant 0 : index
    %c0_0 = arith.constant 0 : index
    %0 = vector.load %arg1[%c0, %c0_0] : memref<32x128xf32, #tpu.memory_space<vmem>>, vector<32x128xf32>
    %c0_1 = arith.constant 0 : index
    %c0_2 = arith.constant 0 : index
    %1 = vector.load %arg5[%c0_1, %c0_2] : memref<128x8xf32, #tpu.memory_space<vmem>>, vector<128x8xf32>
    %c0_3 = arith.constant 0 : index
    %c0_4 = arith.constant 0 : index
    %2 = vector.load %arg6[%c0_3, %c0_4] : memref<8x128xf32, #tpu.memory_space<vmem>>, vector<8x128xf32>
    %c0_5 = arith.constant 0 : index
    %c0_6 = arith.constant 0 : index
    %3 = vector.load %arg4[%c0_5, %c0_6] : memref<4x8xf32, #tpu.memory_space<vmem>>, vector<4x8xf32>
    %4 = tpu.iota {dimensions = array<i32: 0>} : vector<32x128xi32>
    %c16_i32 = arith.constant 16 : i32
    %c0_i32 = arith.constant 0 : i32
    %5 = arith.cmpi eq, %c16_i32, %c0_i32 : i32
    %c1_i32 = arith.constant 1 : i32
    %6 = arith.select %5, %c1_i32, %c16_i32 : i32
    %7 = vector.broadcast %6 : i32 to vector<32x128xi32>
    %8 = arith.remsi %4, %7 : vector<32x128xi32>
    %c0_i32_7 = arith.constant 0 : i32
    %9 = vector.broadcast %c0_i32_7 : i32 to vector<32x128xi32>
    %10 = arith.cmpi ne, %8, %9 : vector<32x128xi32>
    %c0_i32_8 = arith.constant 0 : i32
    %11 = vector.broadcast %c0_i32_8 : i32 to vector<32x128xi32>
    %12 = arith.cmpi slt, %8, %11 : vector<32x128xi32>
    %c0_i32_9 = arith.constant 0 : i32
    %13 = arith.cmpi slt, %6, %c0_i32_9 : i32
    %14 = vector.broadcast %13 : i1 to vector<32x128xi1>
    %15 = vector.broadcast %14 : vector<32x128xi1> to vector<32x128xi1>
    %16 = arith.xori %12, %15 : vector<32x128xi1>
    %17 = arith.andi %16, %10 : vector<32x128xi1>
    %18 = vector.broadcast %6 : i32 to vector<32x128xi32>
    %19 = arith.addi %8, %18 : vector<32x128xi32>
    %20 = arith.select %17, %19, %8 : vector<32x128xi1>, vector<32x128xi32>
    %c1_i32_10 = arith.constant 1 : i32
    %21 = vector.broadcast %c1_i32_10 : i32 to vector<32x128xi32>
    %22 = arith.cmpi sge, %20, %21 : vector<32x128xi32>
    %c16_i32_11 = arith.constant 16 : i32
    %c0_i32_12 = arith.constant 0 : i32
    %23 = arith.cmpi eq, %c16_i32_11, %c0_i32_12 : i32
    %c1_i32_13 = arith.constant 1 : i32
    %24 = arith.select %23, %c1_i32_13, %c16_i32_11 : i32
    %25 = vector.broadcast %24 : i32 to vector<32x128xi32>
    %26 = arith.remsi %4, %25 : vector<32x128xi32>
    %c0_i32_14 = arith.constant 0 : i32
    %27 = vector.broadcast %c0_i32_14 : i32 to vector<32x128xi32>
    %28 = arith.cmpi ne, %26, %27 : vector<32x128xi32>
    %c0_i32_15 = arith.constant 0 : i32
    %29 = vector.broadcast %c0_i32_15 : i32 to vector<32x128xi32>
    %30 = arith.cmpi slt, %26, %29 : vector<32x128xi32>
    %c0_i32_16 = arith.constant 0 : i32
    %31 = arith.cmpi slt, %24, %c0_i32_16 : i32
    %32 = vector.broadcast %31 : i1 to vector<32x128xi1>
    %33 = vector.broadcast %32 : vector<32x128xi1> to vector<32x128xi1>
    %34 = arith.xori %30, %33 : vector<32x128xi1>
    %35 = arith.andi %34, %28 : vector<32x128xi1>
    %36 = vector.broadcast %24 : i32 to vector<32x128xi32>
    %37 = arith.addi %26, %36 : vector<32x128xi32>
    %38 = arith.select %35, %37, %26 : vector<32x128xi1>, vector<32x128xi32>
    %c15_i32 = arith.constant 15 : i32
    %39 = vector.broadcast %c15_i32 : i32 to vector<32x128xi32>
    %40 = arith.cmpi slt, %38, %39 : vector<32x128xi32>
    %cst = arith.constant 0.000000e+00 : f32
    %41 = vector.broadcast %cst : f32 to vector<1x128xf32>
    %42 = vector.extract_strided_slice %0 {offsets = [0, 0], sizes = [31, 128], strides = [1, 1]} : vector<32x128xf32> to vector<31x128xf32>
    %43 = tpu.concatenate %41, %42 in 0 : vector<1x128xf32>, vector<31x128xf32> -> vector<32x128xf32>
    %cst_17 = arith.constant 0.000000e+00 : f32
    %44 = vector.broadcast %cst_17 : f32 to vector<32x128xf32>
    %45 = arith.select %22, %43, %44 : vector<32x128xi1>, vector<32x128xf32>
    %cst_18 = arith.constant 0.000000e+00 : f32
    %46 = vector.broadcast %cst_18 : f32 to vector<1x128xf32>
    %47 = vector.extract_strided_slice %0 {offsets = [1, 0], sizes = [31, 128], strides = [1, 1]} : vector<32x128xf32> to vector<31x128xf32>
    %48 = tpu.concatenate %47, %46 in 0 : vector<31x128xf32>, vector<1x128xf32> -> vector<32x128xf32>
    %cst_19 = arith.constant 0.000000e+00 : f32
    %49 = vector.broadcast %cst_19 : f32 to vector<32x128xf32>
    %50 = arith.select %40, %48, %49 : vector<32x128xi1>, vector<32x128xf32>
    %cst_20 = arith.constant 0.000000e+00 : f32
    %51 = vector.broadcast %cst_20 : f32 to vector<32x128xf32>
    %52 = arith.truncf %45 : vector<32x128xf32> to vector<32x128xbf16>
    %c0_21 = arith.constant 0 : index
    %c0_22 = arith.constant 0 : index
    %c0_23 = arith.constant 0 : index
    %53 = vector.load %arg2[%c0_21, %c0_22, %c0_23] : memref<3x128x128xbf16, #tpu.memory_space<vmem>>, vector<1x128x128xbf16>
    %54 = vector.shape_cast %53 : vector<1x128x128xbf16> to vector<128x128xbf16>
    %cst_24 = arith.constant dense<0.000000e+00> : vector<32x128xf32>
    %55 = tpu.matmul %52, %54, %cst_24 {dimension_numbers = #tpu.dot_dimension_numbers<[1], [0], [0], [1], [0, 0, 1, 1], [], []>} : vector<32x128xbf16>, vector<128x128xbf16>, vector<32x128xf32> -> vector<32x128xf32>
    %56 = arith.addf %51, %55 : vector<32x128xf32>
    %57 = arith.truncf %0 : vector<32x128xf32> to vector<32x128xbf16>
    %c1 = arith.constant 1 : index
    %c0_25 = arith.constant 0 : index
    %c0_26 = arith.constant 0 : index
    %58 = vector.load %arg2[%c1, %c0_25, %c0_26] : memref<3x128x128xbf16, #tpu.memory_space<vmem>>, vector<1x128x128xbf16>
    %59 = vector.shape_cast %58 : vector<1x128x128xbf16> to vector<128x128xbf16>
    %cst_27 = arith.constant dense<0.000000e+00> : vector<32x128xf32>
    %60 = tpu.matmul %57, %59, %cst_27 {dimension_numbers = #tpu.dot_dimension_numbers<[1], [0], [0], [1], [0, 0, 1, 1], [], []>} : vector<32x128xbf16>, vector<128x128xbf16>, vector<32x128xf32> -> vector<32x128xf32>
    %61 = arith.addf %56, %60 : vector<32x128xf32>
    %62 = arith.truncf %50 : vector<32x128xf32> to vector<32x128xbf16>
    %c2 = arith.constant 2 : index
    %c0_28 = arith.constant 0 : index
    %c0_29 = arith.constant 0 : index
    %63 = vector.load %arg2[%c2, %c0_28, %c0_29] : memref<3x128x128xbf16, #tpu.memory_space<vmem>>, vector<1x128x128xbf16>
    %64 = vector.shape_cast %63 : vector<1x128x128xbf16> to vector<128x128xbf16>
    %cst_30 = arith.constant dense<0.000000e+00> : vector<32x128xf32>
    %65 = tpu.matmul %62, %64, %cst_30 {dimension_numbers = #tpu.dot_dimension_numbers<[1], [0], [0], [1], [0, 0, 1, 1], [], []>} : vector<32x128xbf16>, vector<128x128xbf16>, vector<32x128xf32> -> vector<32x128xf32>
    %66 = arith.addf %61, %65 : vector<32x128xf32>
    %67 = vector.extract_strided_slice %3 {offsets = [0, 0], sizes = [1, 8], strides = [1, 1]} : vector<4x8xf32> to vector<1x8xf32>
    %68 = vector.extract_strided_slice %3 {offsets = [1, 0], sizes = [1, 8], strides = [1, 1]} : vector<4x8xf32> to vector<1x8xf32>
    %cst_31 = arith.constant dense<0.000000e+00> : vector<128xf32>
    %69 = vector.multi_reduction <add>, %66, %cst_31 [0] : vector<32x128xf32> to vector<128xf32>
    %70 = vector.shape_cast %69 : vector<128xf32> to vector<1x128xf32>
    %cst_32 = arith.constant dense<0.000000e+00> : vector<1x8xf32>
    %71 = tpu.matmul %70, %1, %cst_32 {dimension_numbers = #tpu.dot_dimension_numbers<[1], [0], [0], [1], [0, 0, 1, 1], [], []>} : vector<1x128xf32>, vector<128x8xf32>, vector<1x8xf32> -> vector<1x8xf32>
    %cst_33 = arith.constant 5.120000e+02 : f32
    %72 = vector.broadcast %cst_33 : f32 to vector<1x8xf32>
    %73 = arith.divf %71, %72 : vector<1x8xf32>
    %cst_34 = arith.constant dense<0.000000e+00> : vector<1x128xf32>
    %74 = tpu.matmul %73, %2, %cst_34 {dimension_numbers = #tpu.dot_dimension_numbers<[1], [0], [0], [1], [0, 0, 1, 1], [], []>} : vector<1x8xf32>, vector<8x128xf32>, vector<1x128xf32> -> vector<1x128xf32>
    %75 = vector.broadcast %74 : vector<1x128xf32> to vector<32x128xf32>
    %76 = arith.subf %66, %75 : vector<32x128xf32>
    %77 = arith.mulf %76, %76 : vector<32x128xf32>
    %cst_35 = arith.constant dense<0.000000e+00> : vector<128xf32>
    %78 = vector.multi_reduction <add>, %77, %cst_35 [0] : vector<32x128xf32> to vector<128xf32>
    %79 = vector.shape_cast %78 : vector<128xf32> to vector<1x128xf32>
    %cst_36 = arith.constant dense<0.000000e+00> : vector<1x8xf32>
    %80 = tpu.matmul %79, %1, %cst_36 {dimension_numbers = #tpu.dot_dimension_numbers<[1], [0], [0], [1], [0, 0, 1, 1], [], []>} : vector<1x128xf32>, vector<128x8xf32>, vector<1x8xf32> -> vector<1x8xf32>
    %cst_37 = arith.constant 5.120000e+02 : f32
    %81 = vector.broadcast %cst_37 : f32 to vector<1x8xf32>
    %82 = arith.divf %80, %81 : vector<1x8xf32>
    %cst_38 = arith.constant 9.99999974E-6 : f32
    %83 = vector.broadcast %cst_38 : f32 to vector<1x8xf32>
    %84 = arith.addf %82, %83 : vector<1x8xf32>
    %85 = math.rsqrt %84 : vector<1x8xf32>
    %86 = arith.mulf %67, %85 : vector<1x8xf32>
    %87 = arith.mulf %73, %86 : vector<1x8xf32>
    %88 = arith.subf %68, %87 : vector<1x8xf32>
    %cst_39 = arith.constant dense<0.000000e+00> : vector<1x128xf32>
    %89 = tpu.matmul %86, %2, %cst_39 {dimension_numbers = #tpu.dot_dimension_numbers<[1], [0], [0], [1], [0, 0, 1, 1], [], []>} : vector<1x8xf32>, vector<8x128xf32>, vector<1x128xf32> -> vector<1x128xf32>
    %cst_40 = arith.constant dense<0.000000e+00> : vector<1x128xf32>
    %90 = tpu.matmul %88, %2, %cst_40 {dimension_numbers = #tpu.dot_dimension_numbers<[1], [0], [0], [1], [0, 0, 1, 1], [], []>} : vector<1x8xf32>, vector<8x128xf32>, vector<1x128xf32> -> vector<1x128xf32>
    %91 = vector.broadcast %89 : vector<1x128xf32> to vector<32x128xf32>
    %92 = arith.mulf %66, %91 : vector<32x128xf32>
    %93 = vector.broadcast %90 : vector<1x128xf32> to vector<32x128xf32>
    %94 = arith.addf %92, %93 : vector<32x128xf32>
    %cst_41 = arith.constant 0.000000e+00 : f32
    %95 = vector.broadcast %cst_41 : f32 to vector<32x128xf32>
    %96 = arith.maximumf %94, %95 : vector<32x128xf32>
    %cst_42 = arith.constant 0.000000e+00 : f32
    %97 = vector.broadcast %cst_42 : f32 to vector<1x128xf32>
    %98 = vector.extract_strided_slice %96 {offsets = [0, 0], sizes = [31, 128], strides = [1, 1]} : vector<32x128xf32> to vector<31x128xf32>
    %99 = tpu.concatenate %97, %98 in 0 : vector<1x128xf32>, vector<31x128xf32> -> vector<32x128xf32>
    %cst_43 = arith.constant 0.000000e+00 : f32
    %100 = vector.broadcast %cst_43 : f32 to vector<32x128xf32>
    %101 = arith.select %22, %99, %100 : vector<32x128xi1>, vector<32x128xf32>
    %cst_44 = arith.constant 0.000000e+00 : f32
    %102 = vector.broadcast %cst_44 : f32 to vector<1x128xf32>
    %103 = vector.extract_strided_slice %96 {offsets = [1, 0], sizes = [31, 128], strides = [1, 1]} : vector<32x128xf32> to vector<31x128xf32>
    %104 = tpu.concatenate %103, %102 in 0 : vector<31x128xf32>, vector<1x128xf32> -> vector<32x128xf32>
    %cst_45 = arith.constant 0.000000e+00 : f32
    %105 = vector.broadcast %cst_45 : f32 to vector<32x128xf32>
    %106 = arith.select %40, %104, %105 : vector<32x128xi1>, vector<32x128xf32>
    %cst_46 = arith.constant 0.000000e+00 : f32
    %107 = vector.broadcast %cst_46 : f32 to vector<32x128xf32>
    %108 = arith.truncf %101 : vector<32x128xf32> to vector<32x128xbf16>
    %c0_47 = arith.constant 0 : index
    %c0_48 = arith.constant 0 : index
    %c0_49 = arith.constant 0 : index
    %109 = vector.load %arg3[%c0_47, %c0_48, %c0_49] : memref<3x128x128xbf16, #tpu.memory_space<vmem>>, vector<1x128x128xbf16>
    %110 = vector.shape_cast %109 : vector<1x128x128xbf16> to vector<128x128xbf16>
    %cst_50 = arith.constant dense<0.000000e+00> : vector<32x128xf32>
    %111 = tpu.matmul %108, %110, %cst_50 {dimension_numbers = #tpu.dot_dimension_numbers<[1], [0], [0], [1], [0, 0, 1, 1], [], []>} : vector<32x128xbf16>, vector<128x128xbf16>, vector<32x128xf32> -> vector<32x128xf32>
    %112 = arith.addf %107, %111 : vector<32x128xf32>
    %113 = arith.truncf %96 : vector<32x128xf32> to vector<32x128xbf16>
    %c1_51 = arith.constant 1 : index
    %c0_52 = arith.constant 0 : index
    %c0_53 = arith.constant 0 : index
    %114 = vector.load %arg3[%c1_51, %c0_52, %c0_53] : memref<3x128x128xbf16, #tpu.memory_space<vmem>>, vector<1x128x128xbf16>
    %115 = vector.shape_cast %114 : vector<1x128x128xbf16> to vector<128x128xbf16>
    %cst_54 = arith.constant dense<0.000000e+00> : vector<32x128xf32>
    %116 = tpu.matmul %113, %115, %cst_54 {dimension_numbers = #tpu.dot_dimension_numbers<[1], [0], [0], [1], [0, 0, 1, 1], [], []>} : vector<32x128xbf16>, vector<128x128xbf16>, vector<32x128xf32> -> vector<32x128xf32>
    %117 = arith.addf %112, %116 : vector<32x128xf32>
    %118 = arith.truncf %106 : vector<32x128xf32> to vector<32x128xbf16>
    %c2_55 = arith.constant 2 : index
    %c0_56 = arith.constant 0 : index
    %c0_57 = arith.constant 0 : index
    %119 = vector.load %arg3[%c2_55, %c0_56, %c0_57] : memref<3x128x128xbf16, #tpu.memory_space<vmem>>, vector<1x128x128xbf16>
    %120 = vector.shape_cast %119 : vector<1x128x128xbf16> to vector<128x128xbf16>
    %cst_58 = arith.constant dense<0.000000e+00> : vector<32x128xf32>
    %121 = tpu.matmul %118, %120, %cst_58 {dimension_numbers = #tpu.dot_dimension_numbers<[1], [0], [0], [1], [0, 0, 1, 1], [], []>} : vector<32x128xbf16>, vector<128x128xbf16>, vector<32x128xf32> -> vector<32x128xf32>
    %122 = arith.addf %117, %121 : vector<32x128xf32>
    %123 = vector.extract_strided_slice %3 {offsets = [2, 0], sizes = [1, 8], strides = [1, 1]} : vector<4x8xf32> to vector<1x8xf32>
    %124 = vector.extract_strided_slice %3 {offsets = [3, 0], sizes = [1, 8], strides = [1, 1]} : vector<4x8xf32> to vector<1x8xf32>
    %cst_59 = arith.constant dense<0.000000e+00> : vector<128xf32>
    %125 = vector.multi_reduction <add>, %122, %cst_59 [0] : vector<32x128xf32> to vector<128xf32>
    %126 = vector.shape_cast %125 : vector<128xf32> to vector<1x128xf32>
    %cst_60 = arith.constant dense<0.000000e+00> : vector<1x8xf32>
    %127 = tpu.matmul %126, %1, %cst_60 {dimension_numbers = #tpu.dot_dimension_numbers<[1], [0], [0], [1], [0, 0, 1, 1], [], []>} : vector<1x128xf32>, vector<128x8xf32>, vector<1x8xf32> -> vector<1x8xf32>
    %cst_61 = arith.constant 5.120000e+02 : f32
    %128 = vector.broadcast %cst_61 : f32 to vector<1x8xf32>
    %129 = arith.divf %127, %128 : vector<1x8xf32>
    %cst_62 = arith.constant dense<0.000000e+00> : vector<1x128xf32>
    %130 = tpu.matmul %129, %2, %cst_62 {dimension_numbers = #tpu.dot_dimension_numbers<[1], [0], [0], [1], [0, 0, 1, 1], [], []>} : vector<1x8xf32>, vector<8x128xf32>, vector<1x128xf32> -> vector<1x128xf32>
    %131 = vector.broadcast %130 : vector<1x128xf32> to vector<32x128xf32>
    %132 = arith.subf %122, %131 : vector<32x128xf32>
    %133 = arith.mulf %132, %132 : vector<32x128xf32>
    %cst_63 = arith.constant dense<0.000000e+00> : vector<128xf32>
    %134 = vector.multi_reduction <add>, %133, %cst_63 [0] : vector<32x128xf32> to vector<128xf32>
    %135 = vector.shape_cast %134 : vector<128xf32> to vector<1x128xf32>
    %cst_64 = arith.constant dense<0.000000e+00> : vector<1x8xf32>
    %136 = tpu.matmul %135, %1, %cst_64 {dimension_numbers = #tpu.dot_dimension_numbers<[1], [0], [0], [1], [0, 0, 1, 1], [], []>} : vector<1x128xf32>, vector<128x8xf32>, vector<1x8xf32> -> vector<1x8xf32>
    %cst_65 = arith.constant 5.120000e+02 : f32
    %137 = vector.broadcast %cst_65 : f32 to vector<1x8xf32>
    %138 = arith.divf %136, %137 : vector<1x8xf32>
    %cst_66 = arith.constant 9.99999974E-6 : f32
    %139 = vector.broadcast %cst_66 : f32 to vector<1x8xf32>
    %140 = arith.addf %138, %139 : vector<1x8xf32>
    %141 = math.rsqrt %140 : vector<1x8xf32>
    %142 = arith.mulf %123, %141 : vector<1x8xf32>
    %143 = arith.mulf %129, %142 : vector<1x8xf32>
    %144 = arith.subf %124, %143 : vector<1x8xf32>
    %cst_67 = arith.constant dense<0.000000e+00> : vector<1x128xf32>
    %145 = tpu.matmul %142, %2, %cst_67 {dimension_numbers = #tpu.dot_dimension_numbers<[1], [0], [0], [1], [0, 0, 1, 1], [], []>} : vector<1x8xf32>, vector<8x128xf32>, vector<1x128xf32> -> vector<1x128xf32>
    %cst_68 = arith.constant dense<0.000000e+00> : vector<1x128xf32>
    %146 = tpu.matmul %144, %2, %cst_68 {dimension_numbers = #tpu.dot_dimension_numbers<[1], [0], [0], [1], [0, 0, 1, 1], [], []>} : vector<1x8xf32>, vector<8x128xf32>, vector<1x128xf32> -> vector<1x128xf32>
    %147 = vector.broadcast %145 : vector<1x128xf32> to vector<32x128xf32>
    %148 = arith.mulf %122, %147 : vector<32x128xf32>
    %149 = vector.broadcast %146 : vector<1x128xf32> to vector<32x128xf32>
    %150 = arith.addf %148, %149 : vector<32x128xf32>
    %151 = arith.addf %150, %0 : vector<32x128xf32>
    %cst_69 = arith.constant 0.000000e+00 : f32
    %152 = vector.broadcast %cst_69 : f32 to vector<32x128xf32>
    %153 = arith.maximumf %151, %152 : vector<32x128xf32>
    %c0_70 = arith.constant 0 : index
    %c0_71 = arith.constant 0 : index
    %154 = vector.load %arg7[%c0_70, %c0_71] : memref<32x128xf32, #tpu.memory_space<vmem>>, vector<32x128xf32>
    tpu.vector_store %arg7[%c0_70, %c0_71], %153 {strides = array<i32>} : memref<32x128xf32, #tpu.memory_space<vmem>>, vector<32x128xf32>,
    return
  }
  func.func @transform_0(%arg0: i32) -> (i32, i32) {
    %c0_i32 = arith.constant 0 : i32
    %c0_i32_0 = arith.constant 0 : i32
    %c0_i32_1 = arith.constant 0 : i32
    return %c0_i32, %c0_i32_0 : i32, i32
  }
  func.func @transform_1(%arg0: i32) -> (i32, i32, i32) {
    %c0_i32 = arith.constant 0 : i32
    %c0_i32_0 = arith.constant 0 : i32
    %c0_i32_1 = arith.constant 0 : i32
    %c0_i32_2 = arith.constant 0 : i32
    return %c0_i32, %c0_i32_0, %c0_i32_1 : i32, i32, i32
  }
  func.func @transform_2(%arg0: i32) -> (i32, i32, i32) {
    %c0_i32 = arith.constant 0 : i32
    %c0_i32_0 = arith.constant 0 : i32
    %c0_i32_1 = arith.constant 0 : i32
    %c0_i32_2 = arith.constant 0 : i32
    return %c0_i32, %c0_i32_0, %c0_i32_1 : i32, i32, i32
  }
  func.func @transform_3(%arg0: i32) -> (i32, i32) {
    %c0_i32 = arith.constant 0 : i32
    %c0_i32_0 = arith.constant 0 : i32
    %c0_i32_1 = arith.constant 0 : i32
    return %c0_i32, %c0_i32_0 : i32, i32
  }
  func.func @transform_4(%arg0: i32) -> (i32, i32) {
    %c0_i32 = arith.constant 0 : i32
    %c0_i32_0 = arith.constant 0 : i32
    %c0_i32_1 = arith.constant 0 : i32
    return %c0_i32, %c0_i32_0 : i32, i32
  }
  func.func @transform_5(%arg0: i32) -> (i32, i32) {
    %c0_i32 = arith.constant 0 : i32
    %c0_i32_0 = arith.constant 0 : i32
    %c0_i32_1 = arith.constant 0 : i32
    return %c0_i32, %c0_i32_0 : i32, i32
  }
  func.func @transform_6(%arg0: i32) -> (i32, i32) {
    %c0_i32 = arith.constant 0 : i32
    %c0_i32_0 = arith.constant 0 : i32
    %c0_i32_1 = arith.constant 0 : i32
    return %c0_i32, %c0_i32_0 : i32, i32
  }
}

</mosaic_0001>

<llo_original>
// kernel: tpu_custom_call.1
$region0: #{tpu_custom_call.1}
  #allocation0 [shape = 'u32[]', space=smem, size = 0x4, offset = 0x4, fixed_abs, tag = 'smem constant byte address 0x4 - core index']
  #allocation1 [shape = 'u32[144,128]{1,0:T(1,128)}', space=vmem, size = 0x12000, scoped, tag = 'internal scratch']
  %s0 = inlined_call_operand.vmem [shape: f32[32,128], index: 0, kind: input, shape index: {}]
  %s1 = inlined_call_operand.hbm [shape: bf16[3,128,128], index: 1, kind: input, shape index: {}]
  %s2 = inlined_call_operand.hbm [shape: bf16[3,128,128], index: 2, kind: input, shape index: {}]
  %s3 = inlined_call_operand.vmem [shape: f32[4,8], index: 3, kind: input, shape index: {}]
  %s4 = inlined_call_operand.vmem [shape: f32[128,8], index: 4, kind: input, shape index: {}]
  %s5 = inlined_call_operand.vmem [shape: f32[8,128], index: 5, kind: input, shape index: {}]
  %s6 = inlined_call_operand.hbm [shape: f32[32,128], index: 6, kind: output, shape index: {}]
  %s7 = sld [smem:[#allocation0]]
  $region42: #{tpu_custom_call.1} parent=0
    _
  %s9 = ssub.s32 1, %s7
  %s10 = scalar_select 0, %s9, %s7
  $region1: #{tpu_custom_call.1} parent=0
    #allocation2 [shape = 'u8[98304]{0}', space=vmem, size = 0x18000, scoped, tag = 'input window, operand 1, single buffered']
    #allocation3 [shape = 's32[1]{0}', space=sflag, size = 0x4, scoped, tag = 'scoped memory for tpu_custom_call.1']
    #allocation4 [shape = 's32[1]{0}', space=sflag, size = 0x4, scoped, tag = 'scoped memory for tpu_custom_call.1']
    #allocation5 [shape = 'u8[98304]{0}', space=vmem, size = 0x18000, scoped, tag = 'input window, operand 2, single buffered']
    #allocation6 [shape = 's32[1]{0}', space=sflag, size = 0x4, scoped, tag = 'scoped memory for tpu_custom_call.1']
    #allocation7 [shape = 'u8[16384]{0}', space=vmem, size = 0x4000, scoped, tag = 'output window, operand 0, single buffered']
    %11 = vsyncpa [#allocation3], 0
    %12 = vsyncpa [#allocation6], 0
    %13 = vsyncpa [#allocation4], 0
    // Predicated region
    $region2: #{tpu_custom_call.1} parent=1 // pred_check
      _
    $region3: #{tpu_custom_call.1} parent=1 // pred_check_branch
      %15 = sbr.rel (0) target = $region5
    $region4: #{tpu_custom_call.1} parent=1 // pred_region
      _
    $region5: #{tpu_custom_call.1} parent=1 // pred_fallthru
      _
    // Predicated region
    $region6: #{tpu_custom_call.1} parent=1 // pred_check
      _
    $region7: #{tpu_custom_call.1} parent=1 // pred_check_branch
      %17 = sbr.rel (0) target = $region9
    $region8: #{tpu_custom_call.1} parent=1 // pred_region
      %s19 = ssub.s32 3072, 3072
      %20 = vsyncadd [#allocation3], %s19
      %s21 = sshll.u32 [#allocation2], 4
      %s22 = int_to_ptr.vmem [resolvable:$true] %s21
      %27 = dma.hbm_to_vmem [thread:$0]  %s1, 3072, %s22, [#allocation3], 64, 64, 4
    $region9: #{tpu_custom_call.1} parent=1 // pred_fallthru
      _
    // Predicated region
    $region10: #{tpu_custom_call.1} parent=1 // pred_check
      _
    $region11: #{tpu_custom_call.1} parent=1 // pred_check_branch
      %29 = sbr.rel (0) target = $region13
    $region12: #{tpu_custom_call.1} parent=1 // pred_region
      %s31 = ssub.s32 3072, 3072
      %32 = vsyncadd [#allocation6], %s31
      %s33 = sshll.u32 [#allocation5], 4
      %s34 = int_to_ptr.vmem [resolvable:$true] %s33
      %39 = dma.hbm_to_vmem [thread:$0]  %s2, 3072, %s34, [#allocation6], 64, 64, 4
    $region13: #{tpu_custom_call.1} parent=1 // pred_fallthru
      _
    // Predicated region
    $region14: #{tpu_custom_call.1} parent=1 // pred_check
      _
    $region15: #{tpu_custom_call.1} parent=1 // pred_check_branch
      %41 = sbr.rel (0) target = $region17
    $region16: #{tpu_custom_call.1} parent=1 // pred_region
      _
    $region17: #{tpu_custom_call.1} parent=1 // pred_fallthru
      _
    // Predicated region
    $region18: #{tpu_custom_call.1} parent=1 // pred_check
      _
    $region19: #{tpu_custom_call.1} parent=1 // pred_check_branch
      %43 = sbr.rel (0) target = $region21
    $region20: #{tpu_custom_call.1} parent=1 // pred_region
      _
    $region21: #{tpu_custom_call.1} parent=1 // pred_fallthru
      _
    // Predicated region
    $region22: #{tpu_custom_call.1} parent=1 // pred_check
      _
    $region23: #{tpu_custom_call.1} parent=1 // pred_check_branch
      %45 = sbr.rel (0) target = $region25
    $region24: #{tpu_custom_call.1} parent=1 // pred_region
      _
    $region25: #{tpu_custom_call.1} parent=1 // pred_fallthru
      _
    // Predicated region
    $region26: #{tpu_custom_call.1} parent=1 // pred_check
      _
    $region27: #{tpu_custom_call.1} parent=1 // pred_check_branch
      %47 = sbr.rel (0) target = $region29
    $region28: #{tpu_custom_call.1} parent=1 // pred_region
      %48 = dma.done [#allocation3], 3072
    $region29: #{tpu_custom_call.1} parent=1 // pred_fallthru
      _
    // Predicated region
    $region30: #{tpu_custom_call.1} parent=1 // pred_check
      _
    $region31: #{tpu_custom_call.1} parent=1 // pred_check_branch
      %50 = sbr.rel (0) target = $region33
    $region32: #{tpu_custom_call.1} parent=1 // pred_region
      %51 = dma.done [#allocation6], 3072
    $region33: #{tpu_custom_call.1} parent=1 // pred_fallthru
      _
    %v53 = vld [vmem:[%s0] sm:$0xff]
    %v54 = vld [vmem:[%s0 + $0x8] sm:$0xff]
    %v55 = vld [vmem:[%s0 + $0x10] sm:$0xff]
    %v56 = vld [vmem:[%s0 + $0x18] sm:$0xff]
    %v57 = vld [vmem:[%s4] sm:$0xff]
    %v58 = vld [vmem:[%s4 + $0x8] sm:$0xff]
    %v59 = vld [vmem:[%s4 + $0x10] sm:$0xff]
    %v60 = vld [vmem:[%s4 + $0x18] sm:$0xff]
    %v61 = vld [vmem:[%s4 + $0x20] sm:$0xff]
    %v62 = vld [vmem:[%s4 + $0x28] sm:$0xff]
    %v63 = vld [vmem:[%s4 + $0x30] sm:$0xff]
    %v64 = vld [vmem:[%s4 + $0x38] sm:$0xff]
    %v65 = vld [vmem:[%s4 + $0x40] sm:$0xff]
    %v66 = vld [vmem:[%s4 + $0x48] sm:$0xff]
    %v67 = vld [vmem:[%s4 + $0x50] sm:$0xff]
    %v68 = vld [vmem:[%s4 + $0x58] sm:$0xff]
    %v69 = vld [vmem:[%s4 + $0x60] sm:$0xff]
    %v70 = vld [vmem:[%s4 + $0x68] sm:$0xff]
    %v71 = vld [vmem:[%s4 + $0x70] sm:$0xff]
    %v72 = vld [vmem:[%s4 + $0x78] sm:$0xff]
    %v73 = vld [vmem:[%s5] sm:$0xff]
    %v74 = vld [vmem:[%s3] sm:$0xf]
    %v75 = vlaneseq
    %v76 = vshrl.u32 %v75, 7
    %v77 = vadd.s32 %v76, 8
    %v78 = vadd.s32 %v76, 16
    %v79 = vadd.s32 %v76, 24
    %vm80 = vcmp.lt.s32.totalorder %v76, 0
    %v81 = vsub.s32 0, %v76
    %v82 = vsel %vm80, %v81, %v76
    %v83 = vshrl.u32 %v82, 4
    %v84 = vand.u32 %v82, 15
    %v85 = vsub.s32 0, %v84
    %v86 = vsel %vm80, %v85, %v84
    %vm87 = vcmp.lt.s32.totalorder %v77, 0
    %v88 = vsub.s32 0, %v77
    %v89 = vsel %vm87, %v88, %v77
    %v90 = vshrl.u32 %v89, 4
    %v91 = vand.u32 %v89, 15
    %v92 = vsub.s32 0, %v91
    %v93 = vsel %vm87, %v92, %v91
    %vm94 = vcmp.lt.s32.totalorder %v78, 0
    %v95 = vsub.s32 0, %v78
    %v96 = vsel %vm94, %v95, %v78
    %v97 = vshrl.u32 %v96, 4
    %v98 = vand.u32 %v96, 15
    %v99 = vsub.s32 0, %v98
    %v100 = vsel %vm94, %v99, %v98
    %vm101 = vcmp.lt.s32.totalorder %v79, 0
    %v102 = vsub.s32 0, %v79
    %v103 = vsel %vm101, %v102, %v79
    %v104 = vshrl.u32 %v103, 4
    %v105 = vand.u32 %v103, 15
    %v106 = vsub.s32 0, %v105
    %v107 = vsel %vm101, %v106, %v105
    %vm108 = vcmp.ne.s32.totalorder %v86, 0
    %vm109 = vcmp.ne.s32.totalorder %v93, 0
    %vm110 = vcmp.ne.s32.totalorder %v100, 0
    %vm111 = vcmp.ne.s32.totalorder %v107, 0
    %vm112 = vcmp.lt.s32.totalorder %v86, 0
    %vm113 = vcmp.lt.s32.totalorder %v93, 0
    %vm114 = vcmp.lt.s32.totalorder %v100, 0
    %vm115 = vcmp.lt.s32.totalorder %v107, 0
    %vm116 = vmand %vm112, %vm108
    %vm117 = vmand %vm113, %vm109
    %vm118 = vmand %vm114, %vm110
    %vm119 = vmand %vm115, %vm111
    %v120 = vadd.s32 %v86, 16
    %v121 = vadd.s32 %v93, 16
    %v122 = vadd.s32 %v100, 16
    %v123 = vadd.s32 %v107, 16
    %v124 = vsel %vm116, %v120, %v86
    %v125 = vsel %vm117, %v121, %v93
    %v126 = vsel %vm118, %v122, %v100
    %v127 = vsel %vm119, %v123, %v107
    %vm128 = vcmp.ge.s32.totalorder %v124, 1
    %vm129 = vcmp.ge.s32.totalorder %v125, 1
    %vm130 = vcmp.ge.s32.totalorder %v126, 1
    %vm131 = vcmp.ge.s32.totalorder %v127, 1
    %vm132 = vcmp.lt.s32.totalorder %v124, 15
    %vm133 = vcmp.lt.s32.totalorder %v125, 15
    %vm134 = vcmp.lt.s32.totalorder %v126, 15
    %vm135 = vcmp.lt.s32.totalorder %v127, 15
    %vm140 = vcmask 1040384
    %v141 = vrot.slane %v53, 7
    %v142 = vrot.slane %v54, 7
    %v143 = vsel %vm140, %v141, %v142
    %v144 = vrot.slane %v55, 7
    %v145 = vsel %vm140, %v142, %v144
    %v146 = vrot.slane %v56, 7
    %v147 = vsel %vm140, %v144, %v146
    %v152 = vsel %vm140, 0.0, %v141
    %v153 = vsel %vm128, %v152, 0.0
    %v154 = vsel %vm129, %v143, 0.0
    %v155 = vsel %vm130, %v145, 0.0
    %v156 = vsel %vm131, %v147, 0.0
    %vm157 = vcmask 1046528
    %v158 = vrot.slane %v53, 1
    %v159 = vrot.slane %v54, 1
    %v160 = vsel %vm157, %v158, %v159
    %v161 = vrot.slane %v55, 1
    %v162 = vsel %vm157, %v159, %v161
    %v163 = vrot.slane %v56, 1
    %v164 = vsel %vm157, %v161, %v163
    %v169 = vsel %vm157, %v163, 0.0
    %v170 = vsel %vm132, %v160, 0.0
    %v171 = vsel %vm133, %v162, 0.0
    %v172 = vsel %vm134, %v164, 0.0
    %v173 = vsel %vm135, %v169, 0.0
    %v174 = vpack.c.bf16 %v154, %v153
    %v175 = vpack.c.bf16 %v156, %v155
    %v176 = vld [vmem:[#allocation2] sm:$0xf]
    %v177 = vld [vmem:[#allocation2 + $0x4] sm:$0xf]
    %v178 = vld [vmem:[#allocation2 + $0x8] sm:$0xf]
    %v179 = vld [vmem:[#allocation2 + $0xc] sm:$0xf]
    %v180 = vld [vmem:[#allocation2 + $0x10] sm:$0xf]
    %v181 = vld [vmem:[#allocation2 + $0x14] sm:$0xf]
    %v182 = vld [vmem:[#allocation2 + $0x18] sm:$0xf]
    %v183 = vld [vmem:[#allocation2 + $0x1c] sm:$0xf]
    %v184 = vld [vmem:[#allocation2 + $0x20] sm:$0xf]
    %v185 = vld [vmem:[#allocation2 + $0x24] sm:$0xf]
    %v186 = vld [vmem:[#allocation2 + $0x28] sm:$0xf]
    %v187 = vld [vmem:[#allocation2 + $0x2c] sm:$0xf]
    %v188 = vld [vmem:[#allocation2 + $0x30] sm:$0xf]
    %v189 = vld [vmem:[#allocation2 + $0x34] sm:$0xf]
    %v190 = vld [vmem:[#allocation2 + $0x38] sm:$0xf]
    %v191 = vld [vmem:[#allocation2 + $0x3c] sm:$0xf]
    %v192 = vpack.c.bf16 %v54, %v53
    %v193 = vpack.c.bf16 %v56, %v55
    %s194 = scalar_lea.vmem [#allocation2], 64
    %v195 = vld [vmem:[%s194] sm:$0xf]
    %v196 = vld [vmem:[%s194 + $0x4] sm:$0xf]
    %v197 = vld [vmem:[%s194 + $0x8] sm:$0xf]
    %v198 = vld [vmem:[%s194 + $0xc] sm:$0xf]
    %v199 = vld [vmem:[%s194 + $0x10] sm:$0xf]
    %v200 = vld [vmem:[%s194 + $0x14] sm:$0xf]
    %v201 = vld [vmem:[%s194 + $0x18] sm:$0xf]
    %v202 = vld [vmem:[%s194 + $0x1c] sm:$0xf]
    %v203 = vld [vmem:[%s194 + $0x20] sm:$0xf]
    %v204 = vld [vmem:[%s194 + $0x24] sm:$0xf]
    %v205 = vld [vmem:[%s194 + $0x28] sm:$0xf]
    %v206 = vld [vmem:[%s194 + $0x2c] sm:$0xf]
    %v207 = vld [vmem:[%s194 + $0x30] sm:$0xf]
    %v208 = vld [vmem:[%s194 + $0x34] sm:$0xf]
    %v209 = vld [vmem:[%s194 + $0x38] sm:$0xf]
    %v210 = vld [vmem:[%s194 + $0x3c] sm:$0xf]
    %v227 = vunpack.c.l.b16 %v195
    %v228 = vunpack.c.l.b16 %v196
    %v229 = vunpack.c.l.b16 %v197
    %v230 = vunpack.c.l.b16 %v198
    %v231 = vunpack.c.l.b16 %v199
    %v232 = vunpack.c.l.b16 %v200
    %v233 = vunpack.c.l.b16 %v201
    %v234 = vunpack.c.l.b16 %v202
    %v235 = vunpack.c.l.b16 %v203
    %v236 = vunpack.c.l.b16 %v204
    %v237 = vunpack.c.l.b16 %v205
    %v238 = vunpack.c.l.b16 %v206
    %v239 = vunpack.c.l.b16 %v207
    %v240 = vunpack.c.l.b16 %v208
    %v241 = vunpack.c.l.b16 %v209
    %v242 = vunpack.c.l.b16 %v210
    %v243 = vpack.c.b16 %v228, %v227
    %v244 = vpack.c.b16 %v230, %v229
    %v245 = vpack.c.b16 %v232, %v231
    %v246 = vpack.c.b16 %v234, %v233
    %v247 = vpack.c.b16 %v236, %v235
    %v248 = vpack.c.b16 %v238, %v237
    %v249 = vpack.c.b16 %v240, %v239
    %v250 = vpack.c.b16 %v242, %v241
    %259 = vmatprep.subr.bf16.mxu0 0
    %260 = vmatpush1.bf16.msra.mxu0 %v243
    %261 = vmatprep.subr.bf16.mxu0 0
    %262 = vmatpush1.bf16.msra.mxu0 %v244
    %263 = vmatprep.subr.bf16.mxu0 0
    %264 = vmatpush1.bf16.msra.mxu0 %v245
    %265 = vmatprep.subr.bf16.mxu0 0
    %266 = vmatpush1.bf16.msra.mxu0 %v246
    %267 = vmatprep.subr.bf16.mxu0 0
    %268 = vmatpush1.bf16.msra.mxu0 %v247
    %269 = vmatprep.subr.bf16.mxu0 0
    %270 = vmatpush1.bf16.msra.mxu0 %v248
    %271 = vmatprep.subr.bf16.mxu0 0
    %272 = vmatpush1.bf16.msra.mxu0 %v249
    %273 = vmatprep.subr.bf16.mxu0 0
    %274 = vmatpush1.bf16.msra.mxu0 %v250
    %275 = vmatprep.subr.bf16.mxu0 0
    %276 = vmatpush1.bf16.msra.mxu0 0
    %277 = vmatprep.subr.bf16.mxu0 0
    %278 = vmatpush1.bf16.msra.mxu0 0
    %279 = vmatprep.subr.bf16.mxu0 0
    %280 = vmatpush1.bf16.msra.mxu0 0
    %281 = vmatprep.subr.bf16.mxu0 0
    %282 = vmatpush1.bf16.msra.mxu0 0
    %283 = vmatprep.subr.bf16.mxu0 0
    %284 = vmatpush1.bf16.msra.mxu0 0
    %285 = vmatprep.subr.bf16.mxu0 0
    %286 = vmatpush1.bf16.msra.mxu0 0
    %287 = vmatprep.subr.bf16.mxu0 0
    %288 = vmatpush1.bf16.msra.mxu0 0
    %289 = vmatprep.subr.bf16.mxu0 0
    %290 = vmatpush1.bf16.msra.mxu0 0
    %291 = vmatprep.mubr.bf16.mxu0 0
    %292 = vmatmul.mubr.bf16.gmra.mrb[0].mxu0 %v192
    %v293 = vpop.f32.mrb[0].mxu0
    %v294 = vadd.f32 0.0, %v293
    %v295 = vpop.f32.mrb[0].mxu0
    %v296 = vpop.f32.mrb[0].mxu0
    %v297 = vadd.f32 0.0, %v296
    %v298 = vpop.f32.mrb[0].mxu0
    %299 = vmatprep.mubr.bf16.mxu0 0
    %300 = vmatmul.mubr.bf16.gmra.mrb[0].mxu0 %v193
    %v301 = vpop.f32.mrb[0].mxu0
    %v302 = vadd.f32 0.0, %v301
    %v303 = vpop.f32.mrb[0].mxu0
    %v304 = vpop.f32.mrb[0].mxu0
    %v305 = vadd.f32 0.0, %v304
    %v306 = vpop.f32.mrb[0].mxu0
    %307 = vdwg.mxu0
    %v324 = vunpack.c.l.b16 %v176
    %v325 = vunpack.c.l.b16 %v177
    %v326 = vunpack.c.l.b16 %v178
    %v327 = vunpack.c.l.b16 %v179
    %v328 = vunpack.c.l.b16 %v180
    %v329 = vunpack.c.l.b16 %v181
    %v330 = vunpack.c.l.b16 %v182
    %v331 = vunpack.c.l.b16 %v183
    %v332 = vunpack.c.l.b16 %v184
    %v333 = vunpack.c.l.b16 %v185
    %v334 = vunpack.c.l.b16 %v186
    %v335 = vunpack.c.l.b16 %v187
    %v336 = vunpack.c.l.b16 %v188
    %v337 = vunpack.c.l.b16 %v189
    %v338 = vunpack.c.l.b16 %v190
    %v339 = vunpack.c.l.b16 %v191
    %v340 = vpack.c.b16 %v325, %v324
    %v341 = vpack.c.b16 %v327, %v326
    %v342 = vpack.c.b16 %v329, %v328
    %v343 = vpack.c.b16 %v331, %v330
    %v344 = vpack.c.b16 %v333, %v332
    %v345 = vpack.c.b16 %v335, %v334
    %v346 = vpack.c.b16 %v337, %v336
    %v347 = vpack.c.b16 %v339, %v338
    %356 = vmatprep.subr.bf16.mxu0 0
    %357 = vmatpush1.bf16.msra.mxu0 %v340
    %358 = vmatprep.subr.bf16.mxu0 0
    %359 = vmatpush1.bf16.msra.mxu0 %v341
    %360 = vmatprep.subr.bf16.mxu0 0
    %361 = vmatpush1.bf16.msra.mxu0 %v342
    %362 = vmatprep.subr.bf16.mxu0 0
    %363 = vmatpush1.bf16.msra.mxu0 %v343
    %364 = vmatprep.subr.bf16.mxu0 0
    %365 = vmatpush1.bf16.msra.mxu0 %v344
    %366 = vmatprep.subr.bf16.mxu0 0
    %367 = vmatpush1.bf16.msra.mxu0 %v345
    %368 = vmatprep.subr.bf16.mxu0 0
    %369 = vmatpush1.bf16.msra.mxu0 %v346
    %370 = vmatprep.subr.bf16.mxu0 0
    %371 = vmatpush1.bf16.msra.mxu0 %v347
    %372 = vmatprep.subr.bf16.mxu0 0
    %373 = vmatpush1.bf16.msra.mxu0 0
    %374 = vmatprep.subr.bf16.mxu0 0
    %375 = vmatpush1.bf16.msra.mxu0 0
    %376 = vmatprep.subr.bf16.mxu0 0
    %377 = vmatpush1.bf16.msra.mxu0 0
    %378 = vmatprep.subr.bf16.mxu0 0
    %379 = vmatpush1.bf16.msra.mxu0 0
    %380 = vmatprep.subr.bf16.mxu0 0
    %381 = vmatpush1.bf16.msra.mxu0 0
    %382 = vmatprep.subr.bf16.mxu0 0
    %383 = vmatpush1.bf16.msra.mxu0 0
    %384 = vmatprep.subr.bf16.mxu0 0
    %385 = vmatpush1.bf16.msra.mxu0 0
    %386 = vmatprep.subr.bf16.mxu0 0
    %387 = vmatpush1.bf16.msra.mxu0 0
    %388 = vmatprep.mubr.bf16.mxu0 0
    %389 = vmatmul.mubr.bf16.gmra.mrb[0].mxu0 %v174
    %v390 = vpop.f32.mrb[0].mxu0
    %v391 = vadd.f32 %v294, %v390
    %v392 = vpop.f32.mrb[0].mxu0
    %v393 = vpop.f32.mrb[0].mxu0
    %v394 = vadd.f32 %v297, %v393
    %v395 = vpop.f32.mrb[0].mxu0
    %396 = vmatprep.mubr.bf16.mxu0 0
    %397 = vmatmul.mubr.bf16.gmra.mrb[0].mxu0 %v175
    %v398 = vpop.f32.mrb[0].mxu0
    %v399 = vadd.f32 %v302, %v398
    %v400 = vpop.f32.mrb[0].mxu0
    %v401 = vpop.f32.mrb[0].mxu0
    %v402 = vadd.f32 %v305, %v401
    %v403 = vpop.f32.mrb[0].mxu0
    %404 = vdwg.mxu0
    %v405 = vpack.c.bf16 %v171, %v170
    %v406 = vpack.c.bf16 %v173, %v172
    %s407 = scalar_lea.vmem [#allocation2], 128
    %v408 = vld [vmem:[%s407] sm:$0xf]
    %v409 = vld [vmem:[%s407 + $0x4] sm:$0xf]
    %v410 = vld [vmem:[%s407 + $0x8] sm:$0xf]
    %v411 = vld [vmem:[%s407 + $0xc] sm:$0xf]
    %v412 = vld [vmem:[%s407 + $0x10] sm:$0xf]
    %v413 = vld [vmem:[%s407 + $0x14] sm:$0xf]
    %v414 = vld [vmem:[%s407 + $0x18] sm:$0xf]
    %v415 = vld [vmem:[%s407 + $0x1c] sm:$0xf]
    %v416 = vld [vmem:[%s407 + $0x20] sm:$0xf]
    %v417 = vld [vmem:[%s407 + $0x24] sm:$0xf]
    %v418 = vld [vmem:[%s407 + $0x28] sm:$0xf]
    %v419 = vld [vmem:[%s407 + $0x2c] sm:$0xf]
    %v420 = vld [vmem:[%s407 + $0x30] sm:$0xf]
    %v421 = vld [vmem:[%s407 + $0x34] sm:$0xf]
    %v422 = vld [vmem:[%s407 + $0x38] sm:$0xf]
    %v423 = vld [vmem:[%s407 + $0x3c] sm:$0xf]
    %v440 = vunpack.c.l.b16 %v408
    %v441 = vunpack.c.l.b16 %v409
    %v442 = vunpack.c.l.b16 %v410
    %v443 = vunpack.c.l.b16 %v411
    %v444 = vunpack.c.l.b16 %v412
    %v445 = vunpack.c.l.b16 %v413
    %v446 = vunpack.c.l.b16 %v414
    %v447 = vunpack.c.l.b16 %v415
    %v448 = vunpack.c.l.b16 %v416
    %v449 = vunpack.c.l.b16 %v417
    %v450 = vunpack.c.l.b16 %v418
    %v451 = vunpack.c.l.b16 %v419
    %v452 = vunpack.c.l.b16 %v420
    %v453 = vunpack.c.l.b16 %v421
    %v454 = vunpack.c.l.b16 %v422
    %v455 = vunpack.c.l.b16 %v423
    %v456 = vpack.c.b16 %v441, %v440
    %v457 = vpack.c.b16 %v443, %v442
    %v458 = vpack.c.b16 %v445, %v444
    %v459 = vpack.c.b16 %v447, %v446
    %v460 = vpack.c.b16 %v449, %v448
    %v461 = vpack.c.b16 %v451, %v450
    %v462 = vpack.c.b16 %v453, %v452
    %v463 = vpack.c.b16 %v455, %v454
    %472 = vmatprep.subr.bf16.mxu0 0
    %473 = vmatpush1.bf16.msra.mxu0 %v456
    %474 = vmatprep.subr.bf16.mxu0 0
    %475 = vmatpush1.bf16.msra.mxu0 %v457
    %476 = vmatprep.subr.bf16.mxu0 0
    %477 = vmatpush1.bf16.msra.mxu0 %v458
    %478 = vmatprep.subr.bf16.mxu0 0
    %479 = vmatpush1.bf16.msra.mxu0 %v459
    %480 = vmatprep.subr.bf16.mxu0 0
    %481 = vmatpush1.bf16.msra.mxu0 %v460
    %482 = vmatprep.subr.bf16.mxu0 0
    %483 = vmatpush1.bf16.msra.mxu0 %v461
    %484 = vmatprep.subr.bf16.mxu0 0
    %485 = vmatpush1.bf16.msra.mxu0 %v462
    %486 = vmatprep.subr.bf16.mxu0 0
    %487 = vmatpush1.bf16.msra.mxu0 %v463
    %488 = vmatprep.subr.bf16.mxu0 0
    %489 = vmatpush1.bf16.msra.mxu0 0
    %490 = vmatprep.subr.bf16.mxu0 0
    %491 = vmatpush1.bf16.msra.mxu0 0
    %492 = vmatprep.subr.bf16.mxu0 0
    %493 = vmatpush1.bf16.msra.mxu0 0
    %494 = vmatprep.subr.bf16.mxu0 0
    %495 = vmatpush1.bf16.msra.mxu0 0
    %496 = vmatprep.subr.bf16.mxu0 0
    %497 = vmatpush1.bf16.msra.mxu0 0
    %498 = vmatprep.subr.bf16.mxu0 0
    %499 = vmatpush1.bf16.msra.mxu0 0
    %500 = vmatprep.subr.bf16.mxu0 0
    %501 = vmatpush1.bf16.msra.mxu0 0
    %502 = vmatprep.subr.bf16.mxu0 0
    %503 = vmatpush1.bf16.msra.mxu0 0
    %504 = vmatprep.mubr.bf16.mxu0 0
    %505 = vmatmul.mubr.bf16.gmra.mrb[0].mxu0 %v405
    %v506 = vpop.f32.mrb[0].mxu0
    %v507 = vadd.f32 0.0, %v506
    %v508 = vpop.f32.mrb[0].mxu0
    %v509 = vpop.f32.mrb[0].mxu0
    %v510 = vadd.f32 0.0, %v509
    %v511 = vpop.f32.mrb[0].mxu0
    %512 = vmatprep.mubr.bf16.mxu0 0
    %513 = vmatmul.mubr.bf16.gmra.mrb[0].mxu0 %v406
    %v514 = vpop.f32.mrb[0].mxu0
    %v515 = vadd.f32 0.0, %v514
    %v516 = vpop.f32.mrb[0].mxu0
    %v517 = vpop.f32.mrb[0].mxu0
    %v518 = vadd.f32 0.0, %v517
    %v519 = vpop.f32.mrb[0].mxu0
    %520 = vdwg.mxu0
    %v521 = vadd.f32 %v391, %v507
    %v522 = vadd.f32 %v394, %v510
    %v523 = vadd.f32 %v399, %v515
    %v524 = vadd.f32 %v402, %v518
    %v525 = vadd.f32 %v521, %v522
    %v526 = vadd.f32 %v525, %v523
    %v527 = vadd.f32 %v526, %v524
    %v528 = vrot.slane %v527, 4
    %v529 = vadd.f32 %v527, %v528
    %v530 = vrot.slane %v529, 2
    %v531 = vadd.f32 %v529, %v530
    %v532 = vrot.slane %v531, 1
    %v533 = vadd.f32 %v531, %v532
    %534 = vmatprep.subr.mxu0 0.0
    %535 = vmatpush1.msra.mxu0 %v57
    %536 = vmatprep.subr.mxu0 0.0
    %537 = vmatpush1.msra.mxu0 %v58
    %538 = vmatprep.subr.mxu0 0.0
    %539 = vmatpush1.msra.mxu0 %v59
    %540 = vmatprep.subr.mxu0 0.0
    %541 = vmatpush1.msra.mxu0 %v60
    %542 = vmatprep.subr.mxu0 0.0
    %543 = vmatpush1.msra.mxu0 %v61
    %544 = vmatprep.subr.mxu0 0.0
    %545 = vmatpush1.msra.mxu0 %v62
    %546 = vmatprep.subr.mxu0 0.0
    %547 = vmatpush1.msra.mxu0 %v63
    %548 = vmatprep.subr.mxu0 0.0
    %549 = vmatpush1.msra.mxu0 %v64
    %550 = vmatprep.subr.mxu0 0.0
    %551 = vmatpush1.msra.mxu0 %v65
    %552 = vmatprep.subr.mxu0 0.0
    %553 = vmatpush1.msra.mxu0 %v66
    %554 = vmatprep.subr.mxu0 0.0
    %555 = vmatpush1.msra.mxu0 %v67
    %556 = vmatprep.subr.mxu0 0.0
    %557 = vmatpush1.msra.mxu0 %v68
    %558 = vmatprep.subr.mxu0 0.0
    %559 = vmatpush1.msra.mxu0 %v69
    %560 = vmatprep.subr.mxu0 0.0
    %561 = vmatpush1.msra.mxu0 %v70
    %562 = vmatprep.subr.mxu0 0.0
    %563 = vmatpush1.msra.mxu0 %v71
    %564 = vmatprep.subr.mxu0 0.0
    %565 = vmatpush1.msra.mxu0 %v72
    %566 = vmatprep.subr.mxu0 0.0
    %567 = vmatpush1.msra.mxu0 0.0
    %568 = vmatprep.subr.mxu0 0.0
    %569 = vmatpush1.msra.mxu0 0.0
    %570 = vmatprep.subr.mxu0 0.0
    %571 = vmatpush1.msra.mxu0 0.0
    %572 = vmatprep.subr.mxu0 0.0
    %573 = vmatpush1.msra.mxu0 0.0
    %574 = vmatprep.subr.mxu0 0.0
    %575 = vmatpush1.msra.mxu0 0.0
    %576 = vmatprep.subr.mxu0 0.0
    %577 = vmatpush1.msra.mxu0 0.0
    %578 = vmatprep.subr.mxu0 0.0
    %579 = vmatpush1.msra.mxu0 0.0
    %580 = vmatprep.subr.mxu0 0.0
    %581 = vmatpush1.msra.mxu0 0.0
    %582 = vmatprep.subr.mxu0 0.0
    %583 = vmatpush1.msra.mxu0 0.0
    %584 = vmatprep.subr.mxu0 0.0
    %585 = vmatpush1.msra.mxu0 0.0
    %586 = vmatprep.subr.mxu0 0.0
    %587 = vmatpush1.msra.mxu0 0.0
    %588 = vmatprep.subr.mxu0 0.0
    %589 = vmatpush1.msra.mxu0 0.0
    %590 = vmatprep.subr.mxu0 0.0
    %591 = vmatpush1.msra.mxu0 0.0
    %592 = vmatprep.subr.mxu0 0.0
    %593 = vmatpush1.msra.mxu0 0.0
    %594 = vmatprep.subr.mxu0 0.0
    %595 = vmatpush1.msra.mxu0 0.0
    %596 = vmatprep.subr.mxu0 0.0
    %597 = vmatpush1.msra.mxu0 0.0
    %598 = vmatprep.mubr.f32.mxu0 0.0
    %599 = vmatmul.mubr.f32.gmra.mrb[0].mxu0 %v533
    %v600 = vpop.f32.mrb[0].mxu0
    %v601 = vadd.f32 0.0, %v600
    %v602 = vpop.f32.mrb[0].mxu0
    %603 = vdwg.mxu0
    %v604 = vrcp.pop 512.0
    %v605 = vmul.f32 %v601, %v604
    %vm606 = vcmask 64512
    %v608 = vsel %vm606, %v605, 0
    %610 = vmatprep.subr.mxu0 0.0
    %611 = vmatpush1.msra.mxu0 %v73
    %612 = vmatprep.subr.mxu0 0.0
    %613 = vmatpush1.msra.mxu0 0.0
    %614 = vmatprep.subr.mxu0 0.0
    %615 = vmatpush1.msra.mxu0 0.0
    %616 = vmatprep.subr.mxu0 0.0
    %617 = vmatpush1.msra.mxu0 0.0
    %618 = vmatprep.subr.mxu0 0.0
    %619 = vmatpush1.msra.mxu0 0.0
    %620 = vmatprep.subr.mxu0 0.0
    %621 = vmatpush1.msra.mxu0 0.0
    %622 = vmatprep.subr.mxu0 0.0
    %623 = vmatpush1.msra.mxu0 0.0
    %624 = vmatprep.subr.mxu0 0.0
    %625 = vmatpush1.msra.mxu0 0.0
    %626 = vmatprep.subr.mxu0 0.0
    %627 = vmatpush1.msra.mxu0 0.0
    %628 = vmatprep.subr.mxu0 0.0
    %629 = vmatpush1.msra.mxu0 0.0
    %630 = vmatprep.subr.mxu0 0.0
    %631 = vmatpush1.msra.mxu0 0.0
    %632 = vmatprep.subr.mxu0 0.0
    %633 = vmatpush1.msra.mxu0 0.0
    %634 = vmatprep.subr.mxu0 0.0
    %635 = vmatpush1.msra.mxu0 0.0
    %636 = vmatprep.subr.mxu0 0.0
    %637 = vmatpush1.msra.mxu0 0.0
    %638 = vmatprep.subr.mxu0 0.0
    %639 = vmatpush1.msra.mxu0 0.0
    %640 = vmatprep.subr.mxu0 0.0
    %641 = vmatpush1.msra.mxu0 0.0
    %642 = vmatprep.subr.mxu0 0.0
    %643 = vmatpush1.msra.mxu0 0.0
    %644 = vmatprep.subr.mxu0 0.0
    %645 = vmatpush1.msra.mxu0 0.0
    %646 = vmatprep.subr.mxu0 0.0
    %647 = vmatpush1.msra.mxu0 0.0
    %648 = vmatprep.subr.mxu0 0.0
    %649 = vmatpush1.msra.mxu0 0.0
    %650 = vmatprep.subr.mxu0 0.0
    %651 = vmatpush1.msra.mxu0 0.0
    %652 = vmatprep.subr.mxu0 0.0
    %653 = vmatpush1.msra.mxu0 0.0
    %654 = vmatprep.subr.mxu0 0.0
    %655 = vmatpush1.msra.mxu0 0.0
    %656 = vmatprep.subr.mxu0 0.0
    %657 = vmatpush1.msra.mxu0 0.0
    %658 = vmatprep.subr.mxu0 0.0
    %659 = vmatpush1.msra.mxu0 0.0
    %660 = vmatprep.subr.mxu0 0.0
    %661 = vmatpush1.msra.mxu0 0.0
    %662 = vmatprep.subr.mxu0 0.0
    %663 = vmatpush1.msra.mxu0 0.0
    %664 = vmatprep.subr.mxu0 0.0
    %665 = vmatpush1.msra.mxu0 0.0
    %666 = vmatprep.subr.mxu0 0.0
    %667 = vmatpush1.msra.mxu0 0.0
    %668 = vmatprep.subr.mxu0 0.0
    %669 = vmatpush1.msra.mxu0 0.0
    %670 = vmatprep.subr.mxu0 0.0
    %671 = vmatpush1.msra.mxu0 0.0
    %672 = vmatprep.subr.mxu0 0.0
    %673 = vmatpush1.msra.mxu0 0.0
    %674 = vmatprep.mubr.f32.mxu0 0.0
    %675 = vmatmul.mubr.f32.gmra.mrb[0].mxu0 %v608
    %v676 = vpop.f32.mrb[0].mxu0
    %v677 = vadd.f32 0.0, %v676
    %v678 = vpop.f32.mrb[0].mxu0
    %679 = vdwg.mxu0
    %v680 = vlaneseq
    %v681 = vshrl.u32 %v680, 7
    %v682 = vsub.s32 0, %v681
    %v683 = vrot.slane %v677, %v682
    %v684 = vsub.f32 %v521, %v683
    %v685 = vsub.f32 %v522, %v683
    %v686 = vsub.f32 %v523, %v683
    %v687 = vsub.f32 %v524, %v683
    %v688 = vmul.f32 %v684, %v684
    %v689 = vmul.f32 %v685, %v685
    %v690 = vmul.f32 %v686, %v686
    %v691 = vmul.f32 %v687, %v687
    %v692 = vadd.f32 %v688, %v689
    %v693 = vadd.f32 %v692, %v690
    %v694 = vadd.f32 %v693, %v691
    %v695 = vrot.slane %v694, 4
    %v696 = vadd.f32 %v694, %v695
    %v697 = vrot.slane %v696, 2
    %v698 = vadd.f32 %v696, %v697
    %v699 = vrot.slane %v698, 1
    %v700 = vadd.f32 %v698, %v699
    %701 = vmatprep.subr.mxu0 0.0
    %702 = vmatpush1.msra.mxu0 %v57
    %703 = vmatprep.subr.mxu0 0.0
    %704 = vmatpush1.msra.mxu0 %v58
    %705 = vmatprep.subr.mxu0 0.0
    %706 = vmatpush1.msra.mxu0 %v59
    %707 = vmatprep.subr.mxu0 0.0
    %708 = vmatpush1.msra.mxu0 %v60
    %709 = vmatprep.subr.mxu0 0.0
    %710 = vmatpush1.msra.mxu0 %v61
    %711 = vmatprep.subr.mxu0 0.0
    %712 = vmatpush1.msra.mxu0 %v62
    %713 = vmatprep.subr.mxu0 0.0
    %714 = vmatpush1.msra.mxu0 %v63
    %715 = vmatprep.subr.mxu0 0.0
    %716 = vmatpush1.msra.mxu0 %v64
    %717 = vmatprep.subr.mxu0 0.0
    %718 = vmatpush1.msra.mxu0 %v65
    %719 = vmatprep.subr.mxu0 0.0
    %720 = vmatpush1.msra.mxu0 %v66
    %721 = vmatprep.subr.mxu0 0.0
    %722 = vmatpush1.msra.mxu0 %v67
    %723 = vmatprep.subr.mxu0 0.0
    %724 = vmatpush1.msra.mxu0 %v68
    %725 = vmatprep.subr.mxu0 0.0
    %726 = vmatpush1.msra.mxu0 %v69
    %727 = vmatprep.subr.mxu0 0.0
    %728 = vmatpush1.msra.mxu0 %v70
    %729 = vmatprep.subr.mxu0 0.0
    %730 = vmatpush1.msra.mxu0 %v71
    %731 = vmatprep.subr.mxu0 0.0
    %732 = vmatpush1.msra.mxu0 %v72
    %733 = vmatprep.subr.mxu0 0.0
    %734 = vmatpush1.msra.mxu0 0.0
    %735 = vmatprep.subr.mxu0 0.0
    %736 = vmatpush1.msra.mxu0 0.0
    %737 = vmatprep.subr.mxu0 0.0
    %738 = vmatpush1.msra.mxu0 0.0
    %739 = vmatprep.subr.mxu0 0.0
    %740 = vmatpush1.msra.mxu0 0.0
    %741 = vmatprep.subr.mxu0 0.0
    %742 = vmatpush1.msra.mxu0 0.0
    %743 = vmatprep.subr.mxu0 0.0
    %744 = vmatpush1.msra.mxu0 0.0
    %745 = vmatprep.subr.mxu0 0.0
    %746 = vmatpush1.msra.mxu0 0.0
    %747 = vmatprep.subr.mxu0 0.0
    %748 = vmatpush1.msra.mxu0 0.0
    %749 = vmatprep.subr.mxu0 0.0
    %750 = vmatpush1.msra.mxu0 0.0
    %751 = vmatprep.subr.mxu0 0.0
    %752 = vmatpush1.msra.mxu0 0.0
    %753 = vmatprep.subr.mxu0 0.0
    %754 = vmatpush1.msra.mxu0 0.0
    %755 = vmatprep.subr.mxu0 0.0
    %756 = vmatpush1.msra.mxu0 0.0
    %757 = vmatprep.subr.mxu0 0.0
    %758 = vmatpush1.msra.mxu0 0.0
    %759 = vmatprep.subr.mxu0 0.0
    %760 = vmatpush1.msra.mxu0 0.0
    %761 = vmatprep.subr.mxu0 0.0
    %762 = vmatpush1.msra.mxu0 0.0
    %763 = vmatprep.subr.mxu0 0.0
    %764 = vmatpush1.msra.mxu0 0.0
    %765 = vmatprep.mubr.f32.mxu0 0.0
    %766 = vmatmul.mubr.f32.gmra.mrb[0].mxu0 %v700
    %v767 = vpop.f32.mrb[0].mxu0
    %v768 = vadd.f32 0.0, %v767
    %v769 = vpop.f32.mrb[0].mxu0
    %770 = vdwg.mxu0
    %v771 = vmul.f32 %v768, %v604
    %v772 = vadd.f32 %v771, 1e-05
    %v773 = vrsqrt.pop %v772
    %v774 = vmul.f32 %v74, %v773
    %v775 = vmul.f32 %v605, %v774
    %v777 = vrot.slane %v775, 7
    %v779 = vsub.f32 %v74, %v777
    %v781 = vsel %vm606, %v774, 0
    %783 = vmatprep.subr.mxu0 0.0
    %784 = vmatpush1.msra.mxu0 %v73
    %785 = vmatprep.subr.mxu0 0.0
    %786 = vmatpush1.msra.mxu0 0.0
    %787 = vmatprep.subr.mxu0 0.0
    %788 = vmatpush1.msra.mxu0 0.0
    %789 = vmatprep.subr.mxu0 0.0
    %790 = vmatpush1.msra.mxu0 0.0
    %791 = vmatprep.subr.mxu0 0.0
    %792 = vmatpush1.msra.mxu0 0.0
    %793 = vmatprep.subr.mxu0 0.0
    %794 = vmatpush1.msra.mxu0 0.0
    %795 = vmatprep.subr.mxu0 0.0
    %796 = vmatpush1.msra.mxu0 0.0
    %797 = vmatprep.subr.mxu0 0.0
    %798 = vmatpush1.msra.mxu0 0.0
    %799 = vmatprep.subr.mxu0 0.0
    %800 = vmatpush1.msra.mxu0 0.0
    %801 = vmatprep.subr.mxu0 0.0
    %802 = vmatpush1.msra.mxu0 0.0
    %803 = vmatprep.subr.mxu0 0.0
    %804 = vmatpush1.msra.mxu0 0.0
    %805 = vmatprep.subr.mxu0 0.0
    %806 = vmatpush1.msra.mxu0 0.0
    %807 = vmatprep.subr.mxu0 0.0
    %808 = vmatpush1.msra.mxu0 0.0
    %809 = vmatprep.subr.mxu0 0.0
    %810 = vmatpush1.msra.mxu0 0.0
    %811 = vmatprep.subr.mxu0 0.0
    %812 = vmatpush1.msra.mxu0 0.0
    %813 = vmatprep.subr.mxu0 0.0
    %814 = vmatpush1.msra.mxu0 0.0
    %815 = vmatprep.subr.mxu0 0.0
    %816 = vmatpush1.msra.mxu0 0.0
    %817 = vmatprep.subr.mxu0 0.0
    %818 = vmatpush1.msra.mxu0 0.0
    %819 = vmatprep.subr.mxu0 0.0
    %820 = vmatpush1.msra.mxu0 0.0
    %821 = vmatprep.subr.mxu0 0.0
    %822 = vmatpush1.msra.mxu0 0.0
    %823 = vmatprep.subr.mxu0 0.0
    %824 = vmatpush1.msra.mxu0 0.0
    %825 = vmatprep.subr.mxu0 0.0
    %826 = vmatpush1.msra.mxu0 0.0
    %827 = vmatprep.subr.mxu0 0.0
    %828 = vmatpush1.msra.mxu0 0.0
    %829 = vmatprep.subr.mxu0 0.0
    %830 = vmatpush1.msra.mxu0 0.0
    %831 = vmatprep.subr.mxu0 0.0
    %832 = vmatpush1.msra.mxu0 0.0
    %833 = vmatprep.subr.mxu0 0.0
    %834 = vmatpush1.msra.mxu0 0.0
    %835 = vmatprep.subr.mxu0 0.0
    %836 = vmatpush1.msra.mxu0 0.0
    %837 = vmatprep.subr.mxu0 0.0
    %838 = vmatpush1.msra.mxu0 0.0
    %839 = vmatprep.subr.mxu0 0.0
    %840 = vmatpush1.msra.mxu0 0.0
    %841 = vmatprep.subr.mxu0 0.0
    %842 = vmatpush1.msra.mxu0 0.0
    %843 = vmatprep.subr.mxu0 0.0
    %844 = vmatpush1.msra.mxu0 0.0
    %845 = vmatprep.subr.mxu0 0.0
    %846 = vmatpush1.msra.mxu0 0.0
    %847 = vmatprep.mubr.f32.mxu0 0.0
    %848 = vmatmul.mubr.f32.gmra.mrb[0].mxu0 %v781
    %v849 = vpop.f32.mrb[0].mxu0
    %v850 = vadd.f32 0.0, %v849
    %v851 = vpop.f32.mrb[0].mxu0
    %852 = vdwg.mxu0
    %v854 = vrot.slane %v779, 1
    %v855 = vsel %vm606, %v854, 0
    %857 = vmatprep.subr.mxu0 0.0
    %858 = vmatpush1.msra.mxu0 %v73
    %859 = vmatprep.subr.mxu0 0.0
    %860 = vmatpush1.msra.mxu0 0.0
    %861 = vmatprep.subr.mxu0 0.0
    %862 = vmatpush1.msra.mxu0 0.0
    %863 = vmatprep.subr.mxu0 0.0
    %864 = vmatpush1.msra.mxu0 0.0
    %865 = vmatprep.subr.mxu0 0.0
    %866 = vmatpush1.msra.mxu0 0.0
    %867 = vmatprep.subr.mxu0 0.0
    %868 = vmatpush1.msra.mxu0 0.0
    %869 = vmatprep.subr.mxu0 0.0
    %870 = vmatpush1.msra.mxu0 0.0
    %871 = vmatprep.subr.mxu0 0.0
    %872 = vmatpush1.msra.mxu0 0.0
    %873 = vmatprep.subr.mxu0 0.0
    %874 = vmatpush1.msra.mxu0 0.0
    %875 = vmatprep.subr.mxu0 0.0
    %876 = vmatpush1.msra.mxu0 0.0
    %877 = vmatprep.subr.mxu0 0.0
    %878 = vmatpush1.msra.mxu0 0.0
    %879 = vmatprep.subr.mxu0 0.0
    %880 = vmatpush1.msra.mxu0 0.0
    %881 = vmatprep.subr.mxu0 0.0
    %882 = vmatpush1.msra.mxu0 0.0
    %883 = vmatprep.subr.mxu0 0.0
    %884 = vmatpush1.msra.mxu0 0.0
    %885 = vmatprep.subr.mxu0 0.0
    %886 = vmatpush1.msra.mxu0 0.0
    %887 = vmatprep.subr.mxu0 0.0
    %888 = vmatpush1.msra.mxu0 0.0
    %889 = vmatprep.subr.mxu0 0.0
    %890 = vmatpush1.msra.mxu0 0.0
    %891 = vmatprep.subr.mxu0 0.0
    %892 = vmatpush1.msra.mxu0 0.0
    %893 = vmatprep.subr.mxu0 0.0
    %894 = vmatpush1.msra.mxu0 0.0
    %895 = vmatprep.subr.mxu0 0.0
    %896 = vmatpush1.msra.mxu0 0.0
    %897 = vmatprep.subr.mxu0 0.0
    %898 = vmatpush1.msra.mxu0 0.0
    %899 = vmatprep.subr.mxu0 0.0
    %900 = vmatpush1.msra.mxu0 0.0
    %901 = vmatprep.subr.mxu0 0.0
    %902 = vmatpush1.msra.mxu0 0.0
    %903 = vmatprep.subr.mxu0 0.0
    %904 = vmatpush1.msra.mxu0 0.0
    %905 = vmatprep.subr.mxu0 0.0
    %906 = vmatpush1.msra.mxu0 0.0
    %907 = vmatprep.subr.mxu0 0.0
    %908 = vmatpush1.msra.mxu0 0.0
    %909 = vmatprep.subr.mxu0 0.0
    %910 = vmatpush1.msra.mxu0 0.0
    %911 = vmatprep.subr.mxu0 0.0
    %912 = vmatpush1.msra.mxu0 0.0
    %913 = vmatprep.subr.mxu0 0.0
    %914 = vmatpush1.msra.mxu0 0.0
    %915 = vmatprep.subr.mxu0 0.0
    %916 = vmatpush1.msra.mxu0 0.0
    %917 = vmatprep.subr.mxu0 0.0
    %918 = vmatpush1.msra.mxu0 0.0
    %919 = vmatprep.subr.mxu0 0.0
    %920 = vmatpush1.msra.mxu0 0.0
    %921 = vmatprep.mubr.f32.mxu0 0.0
    %922 = vmatmul.mubr.f32.gmra.mrb[0].mxu0 %v855
    %v923 = vpop.f32.mrb[0].mxu0
    %v924 = vadd.f32 0.0, %v923
    %v925 = vpop.f32.mrb[0].mxu0
    %926 = vdwg.mxu0
    %v927 = vlaneseq
    %v928 = vshrl.u32 %v927, 7
    %v929 = vsub.s32 0, %v928
    %v930 = vrot.slane %v850, %v929
    %v931 = vmul.f32 %v521, %v930
    %v932 = vmul.f32 %v522, %v930
    %v933 = vmul.f32 %v523, %v930
    %v934 = vmul.f32 %v524, %v930
    %v935 = vlaneseq
    %v936 = vshrl.u32 %v935, 7
    %v937 = vsub.s32 0, %v936
    %v938 = vrot.slane %v924, %v937
    %v939 = vadd.f32 %v931, %v938
    %v940 = vadd.f32 %v932, %v938
    %v941 = vadd.f32 %v933, %v938
    %v942 = vadd.f32 %v934, %v938
    %v943 = vmax.f32 %v939, 0.0
    %v944 = vmax.f32 %v940, 0.0
    %v945 = vmax.f32 %v941, 0.0
    %v946 = vmax.f32 %v942, 0.0
    %v951 = vrot.slane %v943, 7
    %v952 = vrot.slane %v944, 7
    %v953 = vsel %vm140, %v951, %v952
    %v954 = vrot.slane %v945, 7
    %v955 = vsel %vm140, %v952, %v954
    %v956 = vrot.slane %v946, 7
    %v957 = vsel %vm140, %v954, %v956
    %v962 = vsel %vm140, 0.0, %v951
    %v963 = vsel %vm128, %v962, 0.0
    %v964 = vsel %vm129, %v953, 0.0
    %v965 = vsel %vm130, %v955, 0.0
    %v966 = vsel %vm131, %v957, 0.0
    %v967 = vrot.slane %v943, 1
    %v968 = vrot.slane %v944, 1
    %v969 = vsel %vm157, %v967, %v968
    %v970 = vrot.slane %v945, 1
    %v971 = vsel %vm157, %v968, %v970
    %v972 = vrot.slane %v946, 1
    %v973 = vsel %vm157, %v970, %v972
    %v978 = vsel %vm157, %v972, 0.0
    %v979 = vsel %vm132, %v969, 0.0
    %v980 = vsel %vm133, %v971, 0.0
    %v981 = vsel %vm134, %v973, 0.0
    %v982 = vsel %vm135, %v978, 0.0
    %v983 = vpack.c.bf16 %v964, %v963
    %v984 = vpack.c.bf16 %v966, %v965
    %v985 = vld [vmem:[#allocation5] sm:$0xf]
    %v986 = vld [vmem:[#allocation5 + $0x4] sm:$0xf]
    %v987 = vld [vmem:[#allocation5 + $0x8] sm:$0xf]
    %v988 = vld [vmem:[#allocation5 + $0xc] sm:$0xf]
    %v989 = vld [vmem:[#allocation5 + $0x10] sm:$0xf]
    %v990 = vld [vmem:[#allocation5 + $0x14] sm:$0xf]
    %v991 = vld [vmem:[#allocation5 + $0x18] sm:$0xf]
    %v992 = vld [vmem:[#allocation5 + $0x1c] sm:$0xf]
    %v993 = vld [vmem:[#allocation5 + $0x20] sm:$0xf]
    %v994 = vld [vmem:[#allocation5 + $0x24] sm:$0xf]
    %v995 = vld [vmem:[#allocation5 + $0x28] sm:$0xf]
    %v996 = vld [vmem:[#allocation5 + $0x2c] sm:$0xf]
    %v997 = vld [vmem:[#allocation5 + $0x30] sm:$0xf]
    %v998 = vld [vmem:[#allocation5 + $0x34] sm:$0xf]
    %v999 = vld [vmem:[#allocation5 + $0x38] sm:$0xf]
    %v1000 = vld [vmem:[#allocation5 + $0x3c] sm:$0xf]
    %v1001 = vpack.c.bf16 %v944, %v943
    %v1002 = vpack.c.bf16 %v946, %v945
    %s1003 = scalar_lea.vmem [#allocation5], 64
    %v1004 = vld [vmem:[%s1003] sm:$0xf]
    %v1005 = vld [vmem:[%s1003 + $0x4] sm:$0xf]
    %v1006 = vld [vmem:[%s1003 + $0x8] sm:$0xf]
    %v1007 = vld [vmem:[%s1003 + $0xc] sm:$0xf]
    %v1008 = vld [vmem:[%s1003 + $0x10] sm:$0xf]
    %v1009 = vld [vmem:[%s1003 + $0x14] sm:$0xf]
    %v1010 = vld [vmem:[%s1003 + $0x18] sm:$0xf]
    %v1011 = vld [vmem:[%s1003 + $0x1c] sm:$0xf]
    %v1012 = vld [vmem:[%s1003 + $0x20] sm:$0xf]
    %v1013 = vld [vmem:[%s1003 + $0x24] sm:$0xf]
    %v1014 = vld [vmem:[%s1003 + $0x28] sm:$0xf]
    %v1015 = vld [vmem:[%s1003 + $0x2c] sm:$0xf]
    %v1016 = vld [vmem:[%s1003 + $0x30] sm:$0xf]
    %v1017 = vld [vmem:[%s1003 + $0x34] sm:$0xf]
    %v1018 = vld [vmem:[%s1003 + $0x38] sm:$0xf]
    %v1019 = vld [vmem:[%s1003 + $0x3c] sm:$0xf]
    %v1036 = vunpack.c.l.b16 %v1004
    %v1037 = vunpack.c.l.b16 %v1005
    %v1038 = vunpack.c.l.b16 %v1006
    %v1039 = vunpack.c.l.b16 %v1007
    %v1040 = vunpack.c.l.b16 %v1008
    %v1041 = vunpack.c.l.b16 %v1009
    %v1042 = vunpack.c.l.b16 %v1010
    %v1043 = vunpack.c.l.b16 %v1011
    %v1044 = vunpack.c.l.b16 %v1012
    %v1045 = vunpack.c.l.b16 %v1013
    %v1046 = vunpack.c.l.b16 %v1014
    %v1047 = vunpack.c.l.b16 %v1015
    %v1048 = vunpack.c.l.b16 %v1016
    %v1049 = vunpack.c.l.b16 %v1017
    %v1050 = vunpack.c.l.b16 %v1018
    %v1051 = vunpack.c.l.b16 %v1019
    %v1052 = vpack.c.b16 %v1037, %v1036
    %v1053 = vpack.c.b16 %v1039, %v1038
    %v1054 = vpack.c.b16 %v1041, %v1040
    %v1055 = vpack.c.b16 %v1043, %v1042
    %v1056 = vpack.c.b16 %v1045, %v1044
    %v1057 = vpack.c.b16 %v1047, %v1046
    %v1058 = vpack.c.b16 %v1049, %v1048
    %v1059 = vpack.c.b16 %v1051, %v1050
    %1068 = vmatprep.subr.bf16.mxu0 0
    %1069 = vmatpush1.bf16.msra.mxu0 %v1052
    %1070 = vmatprep.subr.bf16.mxu0 0
    %1071 = vmatpush1.bf16.msra.mxu0 %v1053
    %1072 = vmatprep.subr.bf16.mxu0 0
    %1073 = vmatpush1.bf16.msra.mxu0 %v1054
    %1074 = vmatprep.subr.bf16.mxu0 0
    %1075 = vmatpush1.bf16.msra.mxu0 %v1055
    %1076 = vmatprep.subr.bf16.mxu0 0
    %1077 = vmatpush1.bf16.msra.mxu0 %v1056
    %1078 = vmatprep.subr.bf16.mxu0 0
    %1079 = vmatpush1.bf16.msra.mxu0 %v1057
    %1080 = vmatprep.subr.bf16.mxu0 0
    %1081 = vmatpush1.bf16.msra.mxu0 %v1058
    %1082 = vmatprep.subr.bf16.mxu0 0
    %1083 = vmatpush1.bf16.msra.mxu0 %v1059
    %1084 = vmatprep.subr.bf16.mxu0 0
    %1085 = vmatpush1.bf16.msra.mxu0 0
    %1086 = vmatprep.subr.bf16.mxu0 0
    %1087 = vmatpush1.bf16.msra.mxu0 0
    %1088 = vmatprep.subr.bf16.mxu0 0
    %1089 = vmatpush1.bf16.msra.mxu0 0
    %1090 = vmatprep.subr.bf16.mxu0 0
    %1091 = vmatpush1.bf16.msra.mxu0 0
    %1092 = vmatprep.subr.bf16.mxu0 0
    %1093 = vmatpush1.bf16.msra.mxu0 0
    %1094 = vmatprep.subr.bf16.mxu0 0
    %1095 = vmatpush1.bf16.msra.mxu0 0
    %1096 = vmatprep.subr.bf16.mxu0 0
    %1097 = vmatpush1.bf16.msra.mxu0 0
    %1098 = vmatprep.subr.bf16.mxu0 0
    %1099 = vmatpush1.bf16.msra.mxu0 0
    %1100 = vmatprep.mubr.bf16.mxu0 0
    %1101 = vmatmul.mubr.bf16.gmra.mrb[0].mxu0 %v1001
    %v1102 = vpop.f32.mrb[0].mxu0
    %v1103 = vadd.f32 0.0, %v1102
    %v1104 = vpop.f32.mrb[0].mxu0
    %v1105 = vpop.f32.mrb[0].mxu0
    %v1106 = vadd.f32 0.0, %v1105
    %v1107 = vpop.f32.mrb[0].mxu0
    %1108 = vmatprep.mubr.bf16.mxu0 0
    %1109 = vmatmul.mubr.bf16.gmra.mrb[0].mxu0 %v1002
    %v1110 = vpop.f32.mrb[0].mxu0
    %v1111 = vadd.f32 0.0, %v1110
    %v1112 = vpop.f32.mrb[0].mxu0
    %v1113 = vpop.f32.mrb[0].mxu0
    %v1114 = vadd.f32 0.0, %v1113
    %v1115 = vpop.f32.mrb[0].mxu0
    %1116 = vdwg.mxu0
    %v1133 = vunpack.c.l.b16 %v985
    %v1134 = vunpack.c.l.b16 %v986
    %v1135 = vunpack.c.l.b16 %v987
    %v1136 = vunpack.c.l.b16 %v988
    %v1137 = vunpack.c.l.b16 %v989
    %v1138 = vunpack.c.l.b16 %v990
    %v1139 = vunpack.c.l.b16 %v991
    %v1140 = vunpack.c.l.b16 %v992
    %v1141 = vunpack.c.l.b16 %v993
    %v1142 = vunpack.c.l.b16 %v994
    %v1143 = vunpack.c.l.b16 %v995
    %v1144 = vunpack.c.l.b16 %v996
    %v1145 = vunpack.c.l.b16 %v997
    %v1146 = vunpack.c.l.b16 %v998
    %v1147 = vunpack.c.l.b16 %v999
    %v1148 = vunpack.c.l.b16 %v1000
    %v1149 = vpack.c.b16 %v1134, %v1133
    %v1150 = vpack.c.b16 %v1136, %v1135
    %v1151 = vpack.c.b16 %v1138, %v1137
    %v1152 = vpack.c.b16 %v1140, %v1139
    %v1153 = vpack.c.b16 %v1142, %v1141
    %v1154 = vpack.c.b16 %v1144, %v1143
    %v1155 = vpack.c.b16 %v1146, %v1145
    %v1156 = vpack.c.b16 %v1148, %v1147
    %1165 = vmatprep.subr.bf16.mxu0 0
    %1166 = vmatpush1.bf16.msra.mxu0 %v1149
    %1167 = vmatprep.subr.bf16.mxu0 0
    %1168 = vmatpush1.bf16.msra.mxu0 %v1150
    %1169 = vmatprep.subr.bf16.mxu0 0
    %1170 = vmatpush1.bf16.msra.mxu0 %v1151
    %1171 = vmatprep.subr.bf16.mxu0 0
    %1172 = vmatpush1.bf16.msra.mxu0 %v1152
    %1173 = vmatprep.subr.bf16.mxu0 0
    %1174 = vmatpush1.bf16.msra.mxu0 %v1153
    %1175 = vmatprep.subr.bf16.mxu0 0
    %1176 = vmatpush1.bf16.msra.mxu0 %v1154
    %1177 = vmatprep.subr.bf16.mxu0 0
    %1178 = vmatpush1.bf16.msra.mxu0 %v1155
    %1179 = vmatprep.subr.bf16.mxu0 0
    %1180 = vmatpush1.bf16.msra.mxu0 %v1156
    %1181 = vmatprep.subr.bf16.mxu0 0
    %1182 = vmatpush1.bf16.msra.mxu0 0
    %1183 = vmatprep.subr.bf16.mxu0 0
    %1184 = vmatpush1.bf16.msra.mxu0 0
    %1185 = vmatprep.subr.bf16.mxu0 0
    %1186 = vmatpush1.bf16.msra.mxu0 0
    %1187 = vmatprep.subr.bf16.mxu0 0
    %1188 = vmatpush1.bf16.msra.mxu0 0
    %1189 = vmatprep.subr.bf16.mxu0 0
    %1190 = vmatpush1.bf16.msra.mxu0 0
    %1191 = vmatprep.subr.bf16.mxu0 0
    %1192 = vmatpush1.bf16.msra.mxu0 0
    %1193 = vmatprep.subr.bf16.mxu0 0
    %1194 = vmatpush1.bf16.msra.mxu0 0
    %1195 = vmatprep.subr.bf16.mxu0 0
    %1196 = vmatpush1.bf16.msra.mxu0 0
    %1197 = vmatprep.mubr.bf16.mxu0 0
    %1198 = vmatmul.mubr.bf16.gmra.mrb[0].mxu0 %v983
    %v1199 = vpop.f32.mrb[0].mxu0
    %v1200 = vadd.f32 %v1103, %v1199
    %v1201 = vpop.f32.mrb[0].mxu0
    %v1202 = vpop.f32.mrb[0].mxu0
    %v1203 = vadd.f32 %v1106, %v1202
    %v1204 = vpop.f32.mrb[0].mxu0
    %1205 = vmatprep.mubr.bf16.mxu0 0
    %1206 = vmatmul.mubr.bf16.gmra.mrb[0].mxu0 %v984
    %v1207 = vpop.f32.mrb[0].mxu0
    %v1208 = vadd.f32 %v1111, %v1207
    %v1209 = vpop.f32.mrb[0].mxu0
    %v1210 = vpop.f32.mrb[0].mxu0
    %v1211 = vadd.f32 %v1114, %v1210
    %v1212 = vpop.f32.mrb[0].mxu0
    %1213 = vdwg.mxu0
    %v1214 = vpack.c.bf16 %v980, %v979
    %v1215 = vpack.c.bf16 %v982, %v981
    %s1216 = scalar_lea.vmem [#allocation5], 128
    %v1217 = vld [vmem:[%s1216] sm:$0xf]
    %v1218 = vld [vmem:[%s1216 + $0x4] sm:$0xf]
    %v1219 = vld [vmem:[%s1216 + $0x8] sm:$0xf]
    %v1220 = vld [vmem:[%s1216 + $0xc] sm:$0xf]
    %v1221 = vld [vmem:[%s1216 + $0x10] sm:$0xf]
    %v1222 = vld [vmem:[%s1216 + $0x14] sm:$0xf]
    %v1223 = vld [vmem:[%s1216 + $0x18] sm:$0xf]
    %v1224 = vld [vmem:[%s1216 + $0x1c] sm:$0xf]
    %v1225 = vld [vmem:[%s1216 + $0x20] sm:$0xf]
    %v1226 = vld [vmem:[%s1216 + $0x24] sm:$0xf]
    %v1227 = vld [vmem:[%s1216 + $0x28] sm:$0xf]
    %v1228 = vld [vmem:[%s1216 + $0x2c] sm:$0xf]
    %v1229 = vld [vmem:[%s1216 + $0x30] sm:$0xf]
    %v1230 = vld [vmem:[%s1216 + $0x34] sm:$0xf]
    %v1231 = vld [vmem:[%s1216 + $0x38] sm:$0xf]
    %v1232 = vld [vmem:[%s1216 + $0x3c] sm:$0xf]
    %v1249 = vunpack.c.l.b16 %v1217
    %v1250 = vunpack.c.l.b16 %v1218
    %v1251 = vunpack.c.l.b16 %v1219
    %v1252 = vunpack.c.l.b16 %v1220
    %v1253 = vunpack.c.l.b16 %v1221
    %v1254 = vunpack.c.l.b16 %v1222
    %v1255 = vunpack.c.l.b16 %v1223
    %v1256 = vunpack.c.l.b16 %v1224
    %v1257 = vunpack.c.l.b16 %v1225
    %v1258 = vunpack.c.l.b16 %v1226
    %v1259 = vunpack.c.l.b16 %v1227
    %v1260 = vunpack.c.l.b16 %v1228
    %v1261 = vunpack.c.l.b16 %v1229
    %v1262 = vunpack.c.l.b16 %v1230
    %v1263 = vunpack.c.l.b16 %v1231
    %v1264 = vunpack.c.l.b16 %v1232
    %v1265 = vpack.c.b16 %v1250, %v1249
    %v1266 = vpack.c.b16 %v1252, %v1251
    %v1267 = vpack.c.b16 %v1254, %v1253
    %v1268 = vpack.c.b16 %v1256, %v1255
    %v1269 = vpack.c.b16 %v1258, %v1257
    %v1270 = vpack.c.b16 %v1260, %v1259
    %v1271 = vpack.c.b16 %v1262, %v1261
    %v1272 = vpack.c.b16 %v1264, %v1263
    %1281 = vmatprep.subr.bf16.mxu0 0
    %1282 = vmatpush1.bf16.msra.mxu0 %v1265
    %1283 = vmatprep.subr.bf16.mxu0 0
    %1284 = vmatpush1.bf16.msra.mxu0 %v1266
    %1285 = vmatprep.subr.bf16.mxu0 0
    %1286 = vmatpush1.bf16.msra.mxu0 %v1267
    %1287 = vmatprep.subr.bf16.mxu0 0
    %1288 = vmatpush1.bf16.msra.mxu0 %v1268
    %1289 = vmatprep.subr.bf16.mxu0 0
    %1290 = vmatpush1.bf16.msra.mxu0 %v1269
    %1291 = vmatprep.subr.bf16.mxu0 0
    %1292 = vmatpush1.bf16.msra.mxu0 %v1270
    %1293 = vmatprep.subr.bf16.mxu0 0
    %1294 = vmatpush1.bf16.msra.mxu0 %v1271
    %1295 = vmatprep.subr.bf16.mxu0 0
    %1296 = vmatpush1.bf16.msra.mxu0 %v1272
    %1297 = vmatprep.subr.bf16.mxu0 0
    %1298 = vmatpush1.bf16.msra.mxu0 0
    %1299 = vmatprep.subr.bf16.mxu0 0
    %1300 = vmatpush1.bf16.msra.mxu0 0
    %1301 = vmatprep.subr.bf16.mxu0 0
    %1302 = vmatpush1.bf16.msra.mxu0 0
    %1303 = vmatprep.subr.bf16.mxu0 0
    %1304 = vmatpush1.bf16.msra.mxu0 0
    %1305 = vmatprep.subr.bf16.mxu0 0
    %1306 = vmatpush1.bf16.msra.mxu0 0
    %1307 = vmatprep.subr.bf16.mxu0 0
    %1308 = vmatpush1.bf16.msra.mxu0 0
    %1309 = vmatprep.subr.bf16.mxu0 0
    %1310 = vmatpush1.bf16.msra.mxu0 0
    %1311 = vmatprep.subr.bf16.mxu0 0
    %1312 = vmatpush1.bf16.msra.mxu0 0
    %1313 = vmatprep.mubr.bf16.mxu0 0
    %1314 = vmatmul.mubr.bf16.gmra.mrb[0].mxu0 %v1214
    %v1315 = vpop.f32.mrb[0].mxu0
    %v1316 = vadd.f32 0.0, %v1315
    %v1317 = vpop.f32.mrb[0].mxu0
    %v1318 = vpop.f32.mrb[0].mxu0
    %v1319 = vadd.f32 0.0, %v1318
    %v1320 = vpop.f32.mrb[0].mxu0
    %1321 = vmatprep.mubr.bf16.mxu0 0
    %1322 = vmatmul.mubr.bf16.gmra.mrb[0].mxu0 %v1215
    %v1323 = vpop.f32.mrb[0].mxu0
    %v1324 = vadd.f32 0.0, %v1323
    %v1325 = vpop.f32.mrb[0].mxu0
    %v1326 = vpop.f32.mrb[0].mxu0
    %v1327 = vadd.f32 0.0, %v1326
    %v1328 = vpop.f32.mrb[0].mxu0
    %1329 = vdwg.mxu0
    %v1330 = vadd.f32 %v1200, %v1316
    %v1331 = vadd.f32 %v1203, %v1319
    %v1332 = vadd.f32 %v1208, %v1324
    %v1333 = vadd.f32 %v1211, %v1327
    %v1334 = vadd.f32 %v1330, %v1331
    %v1335 = vadd.f32 %v1334, %v1332
    %v1336 = vadd.f32 %v1335, %v1333
    %v1337 = vrot.slane %v1336, 4
    %v1338 = vadd.f32 %v1336, %v1337
    %v1339 = vrot.slane %v1338, 2
    %v1340 = vadd.f32 %v1338, %v1339
    %v1341 = vrot.slane %v1340, 1
    %v1342 = vadd.f32 %v1340, %v1341
    %1343 = vmatprep.subr.mxu0 0.0
    %1344 = vmatpush1.msra.mxu0 %v57
    %1345 = vmatprep.subr.mxu0 0.0
    %1346 = vmatpush1.msra.mxu0 %v58
    %1347 = vmatprep.subr.mxu0 0.0
    %1348 = vmatpush1.msra.mxu0 %v59
    %1349 = vmatprep.subr.mxu0 0.0
    %1350 = vmatpush1.msra.mxu0 %v60
    %1351 = vmatprep.subr.mxu0 0.0
    %1352 = vmatpush1.msra.mxu0 %v61
    %1353 = vmatprep.subr.mxu0 0.0
    %1354 = vmatpush1.msra.mxu0 %v62
    %1355 = vmatprep.subr.mxu0 0.0
    %1356 = vmatpush1.msra.mxu0 %v63
    %1357 = vmatprep.subr.mxu0 0.0
    %1358 = vmatpush1.msra.mxu0 %v64
    %1359 = vmatprep.subr.mxu0 0.0
    %1360 = vmatpush1.msra.mxu0 %v65
    %1361 = vmatprep.subr.mxu0 0.0
    %1362 = vmatpush1.msra.mxu0 %v66
    %1363 = vmatprep.subr.mxu0 0.0
    %1364 = vmatpush1.msra.mxu0 %v67
    %1365 = vmatprep.subr.mxu0 0.0
    %1366 = vmatpush1.msra.mxu0 %v68
    %1367 = vmatprep.subr.mxu0 0.0
    %1368 = vmatpush1.msra.mxu0 %v69
    %1369 = vmatprep.subr.mxu0 0.0
    %1370 = vmatpush1.msra.mxu0 %v70
    %1371 = vmatprep.subr.mxu0 0.0
    %1372 = vmatpush1.msra.mxu0 %v71
    %1373 = vmatprep.subr.mxu0 0.0
    %1374 = vmatpush1.msra.mxu0 %v72
    %1375 = vmatprep.subr.mxu0 0.0
    %1376 = vmatpush1.msra.mxu0 0.0
    %1377 = vmatprep.subr.mxu0 0.0
    %1378 = vmatpush1.msra.mxu0 0.0
    %1379 = vmatprep.subr.mxu0 0.0
    %1380 = vmatpush1.msra.mxu0 0.0
    %1381 = vmatprep.subr.mxu0 0.0
    %1382 = vmatpush1.msra.mxu0 0.0
    %1383 = vmatprep.subr.mxu0 0.0
    %1384 = vmatpush1.msra.mxu0 0.0
    %1385 = vmatprep.subr.mxu0 0.0
    %1386 = vmatpush1.msra.mxu0 0.0
    %1387 = vmatprep.subr.mxu0 0.0
    %1388 = vmatpush1.msra.mxu0 0.0
    %1389 = vmatprep.subr.mxu0 0.0
    %1390 = vmatpush1.msra.mxu0 0.0
    %1391 = vmatprep.subr.mxu0 0.0
    %1392 = vmatpush1.msra.mxu0 0.0
    %1393 = vmatprep.subr.mxu0 0.0
    %1394 = vmatpush1.msra.mxu0 0.0
    %1395 = vmatprep.subr.mxu0 0.0
    %1396 = vmatpush1.msra.mxu0 0.0
    %1397 = vmatprep.subr.mxu0 0.0
    %1398 = vmatpush1.msra.mxu0 0.0
    %1399 = vmatprep.subr.mxu0 0.0
    %1400 = vmatpush1.msra.mxu0 0.0
    %1401 = vmatprep.subr.mxu0 0.0
    %1402 = vmatpush1.msra.mxu0 0.0
    %1403 = vmatprep.subr.mxu0 0.0
    %1404 = vmatpush1.msra.mxu0 0.0
    %1405 = vmatprep.subr.mxu0 0.0
    %1406 = vmatpush1.msra.mxu0 0.0
    %1407 = vmatprep.mubr.f32.mxu0 0.0
    %1408 = vmatmul.mubr.f32.gmra.mrb[0].mxu0 %v1342
    %v1409 = vpop.f32.mrb[0].mxu0
    %v1410 = vadd.f32 0.0, %v1409
    %v1411 = vpop.f32.mrb[0].mxu0
    %1412 = vdwg.mxu0
    %v1413 = vmul.f32 %v1410, %v604
    %v1415 = vsel %vm606, %v1413, 0
    %1417 = vmatprep.subr.mxu0 0.0
    %1418 = vmatpush1.msra.mxu0 %v73
    %1419 = vmatprep.subr.mxu0 0.0
    %1420 = vmatpush1.msra.mxu0 0.0
    %1421 = vmatprep.subr.mxu0 0.0
    %1422 = vmatpush1.msra.mxu0 0.0
    %1423 = vmatprep.subr.mxu0 0.0
    %1424 = vmatpush1.msra.mxu0 0.0
    %1425 = vmatprep.subr.mxu0 0.0
    %1426 = vmatpush1.msra.mxu0 0.0
    %1427 = vmatprep.subr.mxu0 0.0
    %1428 = vmatpush1.msra.mxu0 0.0
    %1429 = vmatprep.subr.mxu0 0.0
    %1430 = vmatpush1.msra.mxu0 0.0
    %1431 = vmatprep.subr.mxu0 0.0
    %1432 = vmatpush1.msra.mxu0 0.0
    %1433 = vmatprep.subr.mxu0 0.0
    %1434 = vmatpush1.msra.mxu0 0.0
    %1435 = vmatprep.subr.mxu0 0.0
    %1436 = vmatpush1.msra.mxu0 0.0
    %1437 = vmatprep.subr.mxu0 0.0
    %1438 = vmatpush1.msra.mxu0 0.0
    %1439 = vmatprep.subr.mxu0 0.0
    %1440 = vmatpush1.msra.mxu0 0.0
    %1441 = vmatprep.subr.mxu0 0.0
    %1442 = vmatpush1.msra.mxu0 0.0
    %1443 = vmatprep.subr.mxu0 0.0
    %1444 = vmatpush1.msra.mxu0 0.0
    %1445 = vmatprep.subr.mxu0 0.0
    %1446 = vmatpush1.msra.mxu0 0.0
    %1447 = vmatprep.subr.mxu0 0.0
    %1448 = vmatpush1.msra.mxu0 0.0
    %1449 = vmatprep.subr.mxu0 0.0
    %1450 = vmatpush1.msra.mxu0 0.0
    %1451 = vmatprep.subr.mxu0 0.0
    %1452 = vmatpush1.msra.mxu0 0.0
    %1453 = vmatprep.subr.mxu0 0.0
    %1454 = vmatpush1.msra.mxu0 0.0
    %1455 = vmatprep.subr.mxu0 0.0
    %1456 = vmatpush1.msra.mxu0 0.0
    %1457 = vmatprep.subr.mxu0 0.0
    %1458 = vmatpush1.msra.mxu0 0.0
    %1459 = vmatprep.subr.mxu0 0.0
    %1460 = vmatpush1.msra.mxu0 0.0
    %1461 = vmatprep.subr.mxu0 0.0
    %1462 = vmatpush1.msra.mxu0 0.0
    %1463 = vmatprep.subr.mxu0 0.0
    %1464 = vmatpush1.msra.mxu0 0.0
    %1465 = vmatprep.subr.mxu0 0.0
    %1466 = vmatpush1.msra.mxu0 0.0
    %1467 = vmatprep.subr.mxu0 0.0
    %1468 = vmatpush1.msra.mxu0 0.0
    %1469 = vmatprep.subr.mxu0 0.0
    %1470 = vmatpush1.msra.mxu0 0.0
    %1471 = vmatprep.subr.mxu0 0.0
    %1472 = vmatpush1.msra.mxu0 0.0
    %1473 = vmatprep.subr.mxu0 0.0
    %1474 = vmatpush1.msra.mxu0 0.0
    %1475 = vmatprep.subr.mxu0 0.0
    %1476 = vmatpush1.msra.mxu0 0.0
    %1477 = vmatprep.subr.mxu0 0.0
    %1478 = vmatpush1.msra.mxu0 0.0
    %1479 = vmatprep.subr.mxu0 0.0
    %1480 = vmatpush1.msra.mxu0 0.0
    %1481 = vmatprep.mubr.f32.mxu0 0.0
    %1482 = vmatmul.mubr.f32.gmra.mrb[0].mxu0 %v1415
    %v1483 = vpop.f32.mrb[0].mxu0
    %v1484 = vadd.f32 0.0, %v1483
    %v1485 = vpop.f32.mrb[0].mxu0
    %1486 = vdwg.mxu0
    %v1487 = vlaneseq
    %v1488 = vshrl.u32 %v1487, 7
    %v1489 = vsub.s32 0, %v1488
    %v1490 = vrot.slane %v1484, %v1489
    %v1491 = vsub.f32 %v1330, %v1490
    %v1492 = vsub.f32 %v1331, %v1490
    %v1493 = vsub.f32 %v1332, %v1490
    %v1494 = vsub.f32 %v1333, %v1490
    %v1495 = vmul.f32 %v1491, %v1491
    %v1496 = vmul.f32 %v1492, %v1492
    %v1497 = vmul.f32 %v1493, %v1493
    %v1498 = vmul.f32 %v1494, %v1494
    %v1499 = vadd.f32 %v1495, %v1496
    %v1500 = vadd.f32 %v1499, %v1497
    %v1501 = vadd.f32 %v1500, %v1498
    %v1502 = vrot.slane %v1501, 4
    %v1503 = vadd.f32 %v1501, %v1502
    %v1504 = vrot.slane %v1503, 2
    %v1505 = vadd.f32 %v1503, %v1504
    %v1506 = vrot.slane %v1505, 1
    %v1507 = vadd.f32 %v1505, %v1506
    %1508 = vmatprep.subr.mxu0 0.0
    %1509 = vmatpush1.msra.mxu0 %v57
    %1510 = vmatprep.subr.mxu0 0.0
    %1511 = vmatpush1.msra.mxu0 %v58
    %1512 = vmatprep.subr.mxu0 0.0
    %1513 = vmatpush1.msra.mxu0 %v59
    %1514 = vmatprep.subr.mxu0 0.0
    %1515 = vmatpush1.msra.mxu0 %v60
    %1516 = vmatprep.subr.mxu0 0.0
    %1517 = vmatpush1.msra.mxu0 %v61
    %1518 = vmatprep.subr.mxu0 0.0
    %1519 = vmatpush1.msra.mxu0 %v62
    %1520 = vmatprep.subr.mxu0 0.0
    %1521 = vmatpush1.msra.mxu0 %v63
    %1522 = vmatprep.subr.mxu0 0.0
    %1523 = vmatpush1.msra.mxu0 %v64
    %1524 = vmatprep.subr.mxu0 0.0
    %1525 = vmatpush1.msra.mxu0 %v65
    %1526 = vmatprep.subr.mxu0 0.0
    %1527 = vmatpush1.msra.mxu0 %v66
    %1528 = vmatprep.subr.mxu0 0.0
    %1529 = vmatpush1.msra.mxu0 %v67
    %1530 = vmatprep.subr.mxu0 0.0
    %1531 = vmatpush1.msra.mxu0 %v68
    %1532 = vmatprep.subr.mxu0 0.0
    %1533 = vmatpush1.msra.mxu0 %v69
    %1534 = vmatprep.subr.mxu0 0.0
    %1535 = vmatpush1.msra.mxu0 %v70
    %1536 = vmatprep.subr.mxu0 0.0
    %1537 = vmatpush1.msra.mxu0 %v71
    %1538 = vmatprep.subr.mxu0 0.0
    %1539 = vmatpush1.msra.mxu0 %v72
    %1540 = vmatprep.subr.mxu0 0.0
    %1541 = vmatpush1.msra.mxu0 0.0
    %1542 = vmatprep.subr.mxu0 0.0
    %1543 = vmatpush1.msra.mxu0 0.0
    %1544 = vmatprep.subr.mxu0 0.0
    %1545 = vmatpush1.msra.mxu0 0.0
    %1546 = vmatprep.subr.mxu0 0.0
    %1547 = vmatpush1.msra.mxu0 0.0
    %1548 = vmatprep.subr.mxu0 0.0
    %1549 = vmatpush1.msra.mxu0 0.0
    %1550 = vmatprep.subr.mxu0 0.0
    %1551 = vmatpush1.msra.mxu0 0.0
    %1552 = vmatprep.subr.mxu0 0.0
    %1553 = vmatpush1.msra.mxu0 0.0
    %1554 = vmatprep.subr.mxu0 0.0
    %1555 = vmatpush1.msra.mxu0 0.0
    %1556 = vmatprep.subr.mxu0 0.0
    %1557 = vmatpush1.msra.mxu0 0.0
    %1558 = vmatprep.subr.mxu0 0.0
    %1559 = vmatpush1.msra.mxu0 0.0
    %1560 = vmatprep.subr.mxu0 0.0
    %1561 = vmatpush1.msra.mxu0 0.0
    %1562 = vmatprep.subr.mxu0 0.0
    %1563 = vmatpush1.msra.mxu0 0.0
    %1564 = vmatprep.subr.mxu0 0.0
    %1565 = vmatpush1.msra.mxu0 0.0
    %1566 = vmatprep.subr.mxu0 0.0
    %1567 = vmatpush1.msra.mxu0 0.0
    %1568 = vmatprep.subr.mxu0 0.0
    %1569 = vmatpush1.msra.mxu0 0.0
    %1570 = vmatprep.subr.mxu0 0.0
    %1571 = vmatpush1.msra.mxu0 0.0
    %1572 = vmatprep.mubr.f32.mxu0 0.0
    %1573 = vmatmul.mubr.f32.gmra.mrb[0].mxu0 %v1507
    %v1574 = vpop.f32.mrb[0].mxu0
    %v1575 = vadd.f32 0.0, %v1574
    %v1576 = vpop.f32.mrb[0].mxu0
    %1577 = vdwg.mxu0
    %v1578 = vmul.f32 %v1575, %v604
    %v1579 = vadd.f32 %v1578, 1e-05
    %v1580 = vrsqrt.pop %v1579
    %v1582 = vrot.slane %v1580, 6
    %v1584 = vmul.f32 %v74, %v1582
    %v1586 = vrot.slane %v1584, 2
    %v1588 = vmul.f32 %v1413, %v1586
    %v1590 = vrot.slane %v1588, 5
    %v1592 = vsub.f32 %v74, %v1590
    %v1593 = vsel %vm606, %v1586, 0
    %1595 = vmatprep.subr.mxu0 0.0
    %1596 = vmatpush1.msra.mxu0 %v73
    %1597 = vmatprep.subr.mxu0 0.0
    %1598 = vmatpush1.msra.mxu0 0.0
    %1599 = vmatprep.subr.mxu0 0.0
    %1600 = vmatpush1.msra.mxu0 0.0
    %1601 = vmatprep.subr.mxu0 0.0
    %1602 = vmatpush1.msra.mxu0 0.0
    %1603 = vmatprep.subr.mxu0 0.0
    %1604 = vmatpush1.msra.mxu0 0.0
    %1605 = vmatprep.subr.mxu0 0.0
    %1606 = vmatpush1.msra.mxu0 0.0
    %1607 = vmatprep.subr.mxu0 0.0
    %1608 = vmatpush1.msra.mxu0 0.0
    %1609 = vmatprep.subr.mxu0 0.0
    %1610 = vmatpush1.msra.mxu0 0.0
    %1611 = vmatprep.subr.mxu0 0.0
    %1612 = vmatpush1.msra.mxu0 0.0
    %1613 = vmatprep.subr.mxu0 0.0
    %1614 = vmatpush1.msra.mxu0 0.0
    %1615 = vmatprep.subr.mxu0 0.0
    %1616 = vmatpush1.msra.mxu0 0.0
    %1617 = vmatprep.subr.mxu0 0.0
    %1618 = vmatpush1.msra.mxu0 0.0
    %1619 = vmatprep.subr.mxu0 0.0
    %1620 = vmatpush1.msra.mxu0 0.0
    %1621 = vmatprep.subr.mxu0 0.0
    %1622 = vmatpush1.msra.mxu0 0.0
    %1623 = vmatprep.subr.mxu0 0.0
    %1624 = vmatpush1.msra.mxu0 0.0
    %1625 = vmatprep.subr.mxu0 0.0
    %1626 = vmatpush1.msra.mxu0 0.0
    %1627 = vmatprep.subr.mxu0 0.0
    %1628 = vmatpush1.msra.mxu0 0.0
    %1629 = vmatprep.subr.mxu0 0.0
    %1630 = vmatpush1.msra.mxu0 0.0
    %1631 = vmatprep.subr.mxu0 0.0
    %1632 = vmatpush1.msra.mxu0 0.0
    %1633 = vmatprep.subr.mxu0 0.0
    %1634 = vmatpush1.msra.mxu0 0.0
    %1635 = vmatprep.subr.mxu0 0.0
    %1636 = vmatpush1.msra.mxu0 0.0
    %1637 = vmatprep.subr.mxu0 0.0
    %1638 = vmatpush1.msra.mxu0 0.0
    %1639 = vmatprep.subr.mxu0 0.0
    %1640 = vmatpush1.msra.mxu0 0.0
    %1641 = vmatprep.subr.mxu0 0.0
    %1642 = vmatpush1.msra.mxu0 0.0
    %1643 = vmatprep.subr.mxu0 0.0
    %1644 = vmatpush1.msra.mxu0 0.0
    %1645 = vmatprep.subr.mxu0 0.0
    %1646 = vmatpush1.msra.mxu0 0.0
    %1647 = vmatprep.subr.mxu0 0.0
    %1648 = vmatpush1.msra.mxu0 0.0
    %1649 = vmatprep.subr.mxu0 0.0
    %1650 = vmatpush1.msra.mxu0 0.0
    %1651 = vmatprep.subr.mxu0 0.0
    %1652 = vmatpush1.msra.mxu0 0.0
    %1653 = vmatprep.subr.mxu0 0.0
    %1654 = vmatpush1.msra.mxu0 0.0
    %1655 = vmatprep.subr.mxu0 0.0
    %1656 = vmatpush1.msra.mxu0 0.0
    %1657 = vmatprep.subr.mxu0 0.0
    %1658 = vmatpush1.msra.mxu0 0.0
    %1659 = vmatprep.mubr.f32.mxu0 0.0
    %1660 = vmatmul.mubr.f32.gmra.mrb[0].mxu0 %v1593
    %v1661 = vpop.f32.mrb[0].mxu0
    %v1662 = vadd.f32 0.0, %v1661
    %v1663 = vpop.f32.mrb[0].mxu0
    %1664 = vdwg.mxu0
    %v1666 = vrot.slane %v1592, 3
    %v1667 = vsel %vm606, %v1666, 0
    %1669 = vmatprep.subr.mxu0 0.0
    %1670 = vmatpush1.msra.mxu0 %v73
    %1671 = vmatprep.subr.mxu0 0.0
    %1672 = vmatpush1.msra.mxu0 0.0
    %1673 = vmatprep.subr.mxu0 0.0
    %1674 = vmatpush1.msra.mxu0 0.0
    %1675 = vmatprep.subr.mxu0 0.0
    %1676 = vmatpush1.msra.mxu0 0.0
    %1677 = vmatprep.subr.mxu0 0.0
    %1678 = vmatpush1.msra.mxu0 0.0
    %1679 = vmatprep.subr.mxu0 0.0
    %1680 = vmatpush1.msra.mxu0 0.0
    %1681 = vmatprep.subr.mxu0 0.0
    %1682 = vmatpush1.msra.mxu0 0.0
    %1683 = vmatprep.subr.mxu0 0.0
    %1684 = vmatpush1.msra.mxu0 0.0
    %1685 = vmatprep.subr.mxu0 0.0
    %1686 = vmatpush1.msra.mxu0 0.0
    %1687 = vmatprep.subr.mxu0 0.0
    %1688 = vmatpush1.msra.mxu0 0.0
    %1689 = vmatprep.subr.mxu0 0.0
    %1690 = vmatpush1.msra.mxu0 0.0
    %1691 = vmatprep.subr.mxu0 0.0
    %1692 = vmatpush1.msra.mxu0 0.0
    %1693 = vmatprep.subr.mxu0 0.0
    %1694 = vmatpush1.msra.mxu0 0.0
    %1695 = vmatprep.subr.mxu0 0.0
    %1696 = vmatpush1.msra.mxu0 0.0
    %1697 = vmatprep.subr.mxu0 0.0
    %1698 = vmatpush1.msra.mxu0 0.0
    %1699 = vmatprep.subr.mxu0 0.0
    %1700 = vmatpush1.msra.mxu0 0.0
    %1701 = vmatprep.subr.mxu0 0.0
    %1702 = vmatpush1.msra.mxu0 0.0
    %1703 = vmatprep.subr.mxu0 0.0
    %1704 = vmatpush1.msra.mxu0 0.0
    %1705 = vmatprep.subr.mxu0 0.0
    %1706 = vmatpush1.msra.mxu0 0.0
    %1707 = vmatprep.subr.mxu0 0.0
    %1708 = vmatpush1.msra.mxu0 0.0
    %1709 = vmatprep.subr.mxu0 0.0
    %1710 = vmatpush1.msra.mxu0 0.0
    %1711 = vmatprep.subr.mxu0 0.0
    %1712 = vmatpush1.msra.mxu0 0.0
    %1713 = vmatprep.subr.mxu0 0.0
    %1714 = vmatpush1.msra.mxu0 0.0
    %1715 = vmatprep.subr.mxu0 0.0
    %1716 = vmatpush1.msra.mxu0 0.0
    %1717 = vmatprep.subr.mxu0 0.0
    %1718 = vmatpush1.msra.mxu0 0.0
    %1719 = vmatprep.subr.mxu0 0.0
    %1720 = vmatpush1.msra.mxu0 0.0
    %1721 = vmatprep.subr.mxu0 0.0
    %1722 = vmatpush1.msra.mxu0 0.0
    %1723 = vmatprep.subr.mxu0 0.0
    %1724 = vmatpush1.msra.mxu0 0.0
    %1725 = vmatprep.subr.mxu0 0.0
    %1726 = vmatpush1.msra.mxu0 0.0
    %1727 = vmatprep.subr.mxu0 0.0
    %1728 = vmatpush1.msra.mxu0 0.0
    %1729 = vmatprep.subr.mxu0 0.0
    %1730 = vmatpush1.msra.mxu0 0.0
    %1731 = vmatprep.subr.mxu0 0.0
    %1732 = vmatpush1.msra.mxu0 0.0
    %1733 = vmatprep.mubr.f32.mxu0 0.0
    %1734 = vmatmul.mubr.f32.gmra.mrb[0].mxu0 %v1667
    %v1735 = vpop.f32.mrb[0].mxu0
    %v1736 = vadd.f32 0.0, %v1735
    %v1737 = vpop.f32.mrb[0].mxu0
    %1738 = vdwg.mxu0
    %v1739 = vlaneseq
    %v1740 = vshrl.u32 %v1739, 7
    %v1741 = vsub.s32 0, %v1740
    %v1742 = vrot.slane %v1662, %v1741
    %v1743 = vmul.f32 %v1330, %v1742
    %v1744 = vmul.f32 %v1331, %v1742
    %v1745 = vmul.f32 %v1332, %v1742
    %v1746 = vmul.f32 %v1333, %v1742
    %v1747 = vlaneseq
    %v1748 = vshrl.u32 %v1747, 7
    %v1749 = vsub.s32 0, %v1748
    %v1750 = vrot.slane %v1736, %v1749
    %v1751 = vadd.f32 %v1743, %v1750
    %v1752 = vadd.f32 %v1744, %v1750
    %v1753 = vadd.f32 %v1745, %v1750
    %v1754 = vadd.f32 %v1746, %v1750
    %v1755 = vadd.f32 %v1751, %v53
    %v1756 = vadd.f32 %v1752, %v54
    %v1757 = vadd.f32 %v1753, %v55
    %v1758 = vadd.f32 %v1754, %v56
    %v1759 = vmax.f32 %v1755, 0.0
    %v1760 = vmax.f32 %v1756, 0.0
    %v1761 = vmax.f32 %v1757, 0.0
    %v1762 = vmax.f32 %v1758, 0.0
    %1763 = vst [vmem:[#allocation7] sm:$0xff] %v1759
    %1764 = vst [vmem:[#allocation7 + $0x8] sm:$0xff] %v1760
    %1765 = vst [vmem:[#allocation7 + $0x10] sm:$0xff] %v1761
    %1766 = vst [vmem:[#allocation7 + $0x18] sm:$0xff] %v1762
    // Predicated region
    $region34: #{tpu_custom_call.1} parent=1 // pred_check
      _
    $region35: #{tpu_custom_call.1} parent=1 // pred_check_branch
      %1768 = sbr.rel (0) target = $region37
    $region36: #{tpu_custom_call.1} parent=1 // pred_region
      %s1770 = ssub.s32 512, 512
      %1771 = vsyncadd [#allocation4], %s1770
      %s1772 = sshll.u32 [#allocation7], 4
      %s1773 = int_to_ptr.vmem [resolvable:$true] %s1772
      %1778 = dma.vmem_to_hbm [thread:$0]  %s1773, 512, %s6, [#allocation4], 128, 128, 8
    $region37: #{tpu_custom_call.1} parent=1 // pred_fallthru
      _
    // Predicated region
    $region38: #{tpu_custom_call.1} parent=1 // pred_check
      _
    $region39: #{tpu_custom_call.1} parent=1 // pred_check_branch
      %1780 = sbr.rel (0) target = $region41
    $region40: #{tpu_custom_call.1} parent=1 // pred_region
      %1781 = dma.done [#allocation4], 512
    $region41: #{tpu_custom_call.1} parent=1 // pred_fallthru
      _
    %1782 = vsyncpa [#allocation3], 1
    %1783 = vsyncpa [#allocation6], 1
    %1784 = vsyncpa [#allocation4], 1

</llo_original>
